<compile_context>
chip_gen: v6e
topology: v6e:2x2x1
jax: 0.10.0
libtpu: 0.0.40
codegen_flags: <defaults>
</compile_context>

<pallas_src>
import jax
import jax.numpy as jnp
from jax.experimental import pallas as pl
from jax.experimental.pallas import tpu as pltpu
import numpy as np


# -----------------------------------------------------------------------------
# Fused kernel. Per grid step (= one image):
#   refs (all rows are lane-flattened (x, channel) -> x*C + c):
#     x_ref  : (H+2, W*Cin)      x0 rows with a zero halo row on top/bottom
#     se_ref : (H+1, W2*Cskip)   even skip rows  (row H  = zero halo)
#     so_ref : (H+1, W2*Cskip)   odd  skip rows  (row 0  = zero halo)
#     rd_ref : (4, W*Cin,   W2*Cout)  deconv row operators, one per ky
#     r1u    : (3, W2*Cout, W2*Cout)  conv1 row operators (up-channel part)
#     r1s    : (3, W2*Cskip,W2*Cout)  conv1 row operators (skip-channel part)
#     r2     : (3, W2*Cout, W2*Cout)  conv2 row operators
#     bd/b1/b2 : (1, W2*Cout) f32 lane-tiled biases
#     out_ref: (H, 2*W2*Cout)    [even-row | odd-row] pairs (row-major == NHWC)
#   scratch: ue/uo/he/ho : (H+1, W2*Cout) bf16 even/odd row buffers with halo
# -----------------------------------------------------------------------------
def _fused_kernel(x_ref, se_ref, so_ref,
                  rd_ref, r1u_ref, r1s_ref, r2_ref,
                  bd_ref, b1_ref, b2_ref,
                  out_ref,
                  ue_ref, uo_ref, he_ref, ho_ref):
    H = x_ref.shape[0] - 2
    f32 = jnp.float32

    def mm(a, b):
        return jnp.dot(a, b, preferred_element_type=f32)

    # ---------------- ConvTranspose2d(k=4, s=2, p=1), even/odd output rows ---
    bd = bd_ref[...]                       # (1, Ku) f32, hoisted broadcast
    x_mid = x_ref[1:1 + H, :]              # x0 rows 0..H-1
    # even output rows use (ky=1, iy=jy) and (ky=3, iy=jy-1)
    e = bd + mm(x_mid, rd_ref[1]) + mm(x_ref[0:H, :], rd_ref[3])
    # odd output rows use (ky=0, iy=jy+1) and (ky=2, iy=jy)
    o = bd + mm(x_ref[2:2 + H, :], rd_ref[0]) + mm(x_mid, rd_ref[2])

    ue_ref[0:H, :] = e.astype(ue_ref.dtype)
    ue_ref[H:H + 1, :] = jnp.zeros((1, ue_ref.shape[1]), ue_ref.dtype)  # halo
    uo_ref[0:1, :] = jnp.zeros((1, uo_ref.shape[1]), uo_ref.dtype)      # halo
    uo_ref[1:1 + H, :] = o.astype(uo_ref.dtype)

    # ---------------- conv1 3x3 + ReLU (w1 split into up / skip parts) -------
    b1 = b1_ref[...]
    ue0 = ue_ref[0:H, :]
    ue1 = ue_ref[1:1 + H, :]
    uo0 = uo_ref[0:H, :]
    uo1 = uo_ref[1:1 + H, :]
    se0 = se_ref[0:H, :]
    se1 = se_ref[1:1 + H, :]
    so0 = so_ref[0:H, :]
    so1 = so_ref[1:1 + H, :]

    h_e = (b1 + mm(uo0, r1u_ref[0]) + mm(ue0, r1u_ref[1]) + mm(uo1, r1u_ref[2])
              + mm(so0, r1s_ref[0]) + mm(se0, r1s_ref[1]) + mm(so1, r1s_ref[2]))
    h_o = (b1 + mm(ue0, r1u_ref[0]) + mm(uo1, r1u_ref[1]) + mm(ue1, r1u_ref[2])
              + mm(se0, r1s_ref[0]) + mm(so1, r1s_ref[1]) + mm(se1, r1s_ref[2]))

    he_ref[0:H, :] = jnp.maximum(h_e, 0.0).astype(he_ref.dtype)
    he_ref[H:H + 1, :] = jnp.zeros((1, he_ref.shape[1]), he_ref.dtype)  # halo
    ho_ref[0:1, :] = jnp.zeros((1, ho_ref.shape[1]), ho_ref.dtype)      # halo
    ho_ref[1:1 + H, :] = jnp.maximum(h_o, 0.0).astype(ho_ref.dtype)

    # ---------------- conv2 3x3 + ReLU ---------------------------------------
    b2 = b2_ref[...]
    he0 = he_ref[0:H, :]
    he1 = he_ref[1:1 + H, :]
    ho0 = ho_ref[0:H, :]
    ho1 = ho_ref[1:1 + H, :]

    y_e = b2 + mm(ho0, r2_ref[0]) + mm(he0, r2_ref[1]) + mm(ho1, r2_ref[2])
    y_o = b2 + mm(he0, r2_ref[0]) + mm(ho1, r2_ref[1]) + mm(he1, r2_ref[2])

    # one full-width (128-lane) store: [even-row | odd-row] per output row pair
    out_ref[...] = jnp.concatenate(
        [jnp.maximum(y_e, 0.0), jnp.maximum(y_o, 0.0)], axis=1
    ).astype(out_ref.dtype)


# -----------------------------------------------------------------------------
# One-time parameter preprocessing (host side): build the banded row-operator
# matrices from the torch-shaped weights and cast them to bf16.
# -----------------------------------------------------------------------------
def prepare_params(params, H, W):
    wd, bd, w1, b1, w2, b2 = [np.asarray(p, np.float32) for p in params]
    Cin, Cout = wd.shape[0], wd.shape[1]
    Ccat = w1.shape[1]
    W2 = 2 * W

    # deconv row operators: Rd[ky][j*Cin+ci, X*Cout+co] = wd[ci, co, ky, kx]
    # for the (kx, dx) tap of output-column parity X%2 that reads input col j.
    taps = {0: ((1, 1), (3, 0)), 1: ((0, 2), (2, 1))}   # parity -> ((k, d), ..)
    Rd = np.zeros((4, W * Cin, W2 * Cout), np.float32)
    for X in range(W2):
        px, jx = X % 2, X // 2
        for kx, dx in taps[px]:
            j = jx + dx - 1
            if 0 <= j < W:
                for ky in range(4):
                    Rd[ky, j * Cin:(j + 1) * Cin, X * Cout:(X + 1) * Cout] = \
                        wd[:, :, ky, kx]

    # conv3x3(pad=1) row operators: R[dy][xin*Ci+ci, X*Co+co] = w[co, ci, dy, dx]
    def conv_row_op(w_oihw):
        Co, Ci = w_oihw.shape[0], w_oihw.shape[1]
        R = np.zeros((3, W2 * Ci, W2 * Co), np.float32)
        for dy in range(3):
            for X in range(W2):
                for dx in range(3):
                    xin = X + dx - 1
                    if 0 <= xin < W2:
                        R[dy, xin * Ci:(xin + 1) * Ci, X * Co:(X + 1) * Co] = \
                            w_oihw[:, :, dy, dx].T
        return R

    R1u = conv_row_op(w1[:, :Cout])       # acts on the upsampled channels
    R1s = conv_row_op(w1[:, Cout:])       # acts on the skip channels
    R2 = conv_row_op(w2)

    bd_row = np.tile(bd, W2)[None, :]     # (1, W2*Cout), lane X*Cout+co = bd[co]
    b1_row = np.tile(b1, W2)[None, :]
    b2_row = np.tile(b2, W2)[None, :]

    bf = jnp.bfloat16
    return (jnp.asarray(Rd, bf), jnp.asarray(R1u, bf), jnp.asarray(R1s, bf),
            jnp.asarray(R2, bf),
            jnp.asarray(bd_row, jnp.float32), jnp.asarray(b1_row, jnp.float32),
            jnp.asarray(b2_row, jnp.float32))


# -----------------------------------------------------------------------------
# Wrapper: NCHW in / NCHW out (PyTorch convention).
# -----------------------------------------------------------------------------
def unet_up_origin_forward(inputs0, skip, prepped):
    Rd, R1u, R1s, R2, bd_row, b1_row, b2_row = prepped
    N, Cin, H, W = inputs0.shape
    _, Cskip, H2, W2 = skip.shape
    assert H2 == 2 * H and W2 == 2 * W
    Ku = bd_row.shape[1]                  # W2 * Cout
    Cout = Ku // W2
    Kx = W * Cin
    Ks = W2 * Cskip
    bf = jnp.bfloat16

    # ---- input prep (one fused XLA pass per input; no inter-kernel glue) ----
    # x0: NCHW -> lane-flattened rows (W*Cin) + one zero halo row top/bottom.
    x_rows = jnp.transpose(inputs0, (0, 2, 3, 1)).reshape(N, H, Kx)
    x_rows = jnp.pad(x_rows, ((0, 0), (1, 1), (0, 0))).astype(bf)
    # skip: NCHW -> even / odd lane-flattened rows (W2*Cskip) with 1-row halo.
    s_rows = jnp.transpose(skip, (0, 2, 3, 1)).reshape(N, H, 2, Ks)
    s_even = jnp.pad(s_rows[:, :, 0, :], ((0, 0), (0, 1), (0, 0))).astype(bf)
    s_odd = jnp.pad(s_rows[:, :, 1, :], ((0, 0), (1, 0), (0, 0))).astype(bf)

    out_rows = pl.pallas_call(
        _fused_kernel,
        out_shape=jax.ShapeDtypeStruct((N, H, 2 * Ku), jnp.float32),
        grid_spec=pltpu.PrefetchScalarGridSpec(
            num_scalar_prefetch=0,
            grid=(N,),
            in_specs=[
                pl.BlockSpec((None, H + 2, Kx), lambda b: (b, 0, 0)),
                pl.BlockSpec((None, H + 1, Ks), lambda b: (b, 0, 0)),
                pl.BlockSpec((None, H + 1, Ks), lambda b: (b, 0, 0)),
                pl.BlockSpec((4, Kx, Ku), lambda b: (0, 0, 0)),
                pl.BlockSpec((3, Ku, Ku), lambda b: (0, 0, 0)),
                pl.BlockSpec((3, Ks, Ku), lambda b: (0, 0, 0)),
                pl.BlockSpec((3, Ku, Ku), lambda b: (0, 0, 0)),
                pl.BlockSpec((1, Ku), lambda b: (0, 0)),
                pl.BlockSpec((1, Ku), lambda b: (0, 0)),
                pl.BlockSpec((1, Ku), lambda b: (0, 0)),
            ],
            out_specs=pl.BlockSpec((None, H, 2 * Ku), lambda b: (b, 0, 0)),
            scratch_shapes=[pltpu.VMEM((H + 1, Ku), bf)] * 4,
        ),
        compiler_params=pltpu.CompilerParams(
            dimension_semantics=("parallel",),        # v7x: shard batch on 2 TCs
            vmem_limit_bytes=32 * 1024 * 1024,
        ),
    )(x_rows, s_even, s_odd, Rd, R1u, R1s, R2, bd_row, b1_row, b2_row)

    # (N, H, 2*W2*Cout) is row-major identical to (N, H2, W2, Cout): free reshape.
    out = out_rows.reshape(N, H2, W2, Cout)
    return jnp.transpose(out, (0, 3, 1, 2))           # back to NCHW


# -----------------------------------------------------------------------------
# Pure-JAX reference (XLA convs).  Operands and intermediates are rounded to
# bf16 exactly where the kernel rounds them, so only f32 accumulation order
# differs -> tight tolerance stays meaningful.
# -----------------------------------------------------------------------------
def reference_forward(inputs0, skip, params):
    wd, bd, w1, b1, w2, b2 = params
    f32, bf = jnp.float32, jnp.bfloat16
    rnd = lambda t: t.astype(bf).astype(f32)
    hi = jax.lax.Precision.HIGHEST
    dn = ('NCHW', 'OIHW', 'NCHW')
    # ConvTranspose2d(k=4,s=2,p=1) == lhs-dilated conv with flipped kernel
    wflip = jnp.transpose(rnd(wd)[:, :, ::-1, ::-1], (1, 0, 2, 3))
    up = jax.lax.conv_general_dilated(rnd(inputs0), wflip, (1, 1),
                                      ((2, 2), (2, 2)), lhs_dilation=(2, 2),
                                      dimension_numbers=dn, precision=hi)
    up = rnd(up + bd[None, :, None, None])
    cat = jnp.concatenate([up, rnd(skip)], axis=1)
    h = jax.lax.conv_general_dilated(cat, rnd(w1), (1, 1), ((1, 1), (1, 1)),
                                     dimension_numbers=dn, precision=hi)
    h = rnd(jnp.maximum(h + b1[None, :, None, None], 0.0))
    h = jax.lax.conv_general_dilated(h, rnd(w2), (1, 1), ((1, 1), (1, 1)),
                                     dimension_numbers=dn, precision=hi)
    return jnp.maximum(h + b2[None, :, None, None], 0.0)


if __name__ == "__main__":
    # module config: unetUp_origin(in_size=8, out_size=4, is_deconv=True, n_concat=2)
    N, in_size, out_size = 2, 8, 4
    H = W = 8                        # inputs0 spatial; skip is 2x this

    key = jax.random.PRNGKey(0)
    keys = jax.random.split(key, 8)

    def kaiming(k, shape, fan_in):   # synthetic kaiming-style init
        return (jnp.sqrt(2.0 / fan_in) *
                jax.random.normal(k, shape, dtype=jnp.float32))

    wd = kaiming(keys[0], (in_size, out_size, 4, 4), out_size * 16)   # deconv
    bd = 0.01 * jax.random.normal(keys[1], (out_size,), dtype=jnp.float32)
    w1 = kaiming(keys[2], (out_size, in_size, 3, 3), in_size * 9)     # conv1
    b1 = 0.01 * jax.random.normal(keys[3], (out_size,), dtype=jnp.float32)
    w2 = kaiming(keys[4], (out_size, out_size, 3, 3), out_size * 9)   # conv2
    b2 = 0.01 * jax.random.normal(keys[5], (out_size,), dtype=jnp.float32)
    params = (wd, bd, w1, b1, w2, b2)

    inputs0 = jax.random.normal(keys[6], (N, in_size, H, W), dtype=jnp.float32)
    skip = jax.random.normal(keys[7], (N, out_size, 2 * H, 2 * W),
                             dtype=jnp.float32)

    prepped = prepare_params(params, H, W)            # one-time weight repack
    fwd = jax.jit(unet_up_origin_forward)
    out = jax.block_until_ready(fwd(inputs0, skip, prepped))

    ref = jax.block_until_ready(reference_forward(inputs0, skip, params))
    np.testing.assert_allclose(np.asarray(out), np.asarray(ref),
                               rtol=1e-4, atol=1e-4)

    assert out.shape == (N, out_size, 2 * H, 2 * W)
    print("KERNEL_OK")
</pallas_src>

<mosaic_0001>
module attributes {stable_mosaic.version = 11 : i64} {
  func.func @_fused_kernel(%arg0: i32, %arg1: memref<1x10x64xbf16, #tpu.memory_space<vmem>>, %arg2: memref<1x9x64xbf16, #tpu.memory_space<vmem>>, %arg3: memref<1x9x64xbf16, #tpu.memory_space<vmem>>, %arg4: memref<4x64x64xbf16, #tpu.memory_space<vmem>>, %arg5: memref<3x64x64xbf16, #tpu.memory_space<vmem>>, %arg6: memref<3x64x64xbf16, #tpu.memory_space<vmem>>, %arg7: memref<3x64x64xbf16, #tpu.memory_space<vmem>>, %arg8: memref<1x64xf32, #tpu.memory_space<vmem>>, %arg9: memref<1x64xf32, #tpu.memory_space<vmem>>, %arg10: memref<1x64xf32, #tpu.memory_space<vmem>>, %arg11: memref<1x8x128xf32, #tpu.memory_space<vmem>>, %arg12: memref<9x64xbf16, #tpu.memory_space<vmem>>, %arg13: memref<9x64xbf16, #tpu.memory_space<vmem>>, %arg14: memref<9x64xbf16, #tpu.memory_space<vmem>>, %arg15: memref<9x64xbf16, #tpu.memory_space<vmem>>) attributes {dimension_semantics = [#tpu.dimension_semantics<parallel>], iteration_bounds = array<i64: 2>, scalar_prefetch = 0 : i64, scratch_operands = 4 : i64, tpu.core_type = #tpu.core_type<tc>, window_params = [{transform_indices = @transform_0, window_bounds = array<i64: 1, 10, 64>}, {transform_indices = @transform_1, window_bounds = array<i64: 1, 9, 64>}, {transform_indices = @transform_2, window_bounds = array<i64: 1, 9, 64>}, {pipeline_mode = #tpu.pipeline_mode<synchronous>, transform_indices = @transform_3, window_bounds = array<i64: 4, 64, 64>}, {pipeline_mode = #tpu.pipeline_mode<synchronous>, transform_indices = @transform_4, window_bounds = array<i64: 3, 64, 64>}, {pipeline_mode = #tpu.pipeline_mode<synchronous>, transform_indices = @transform_5, window_bounds = array<i64: 3, 64, 64>}, {pipeline_mode = #tpu.pipeline_mode<synchronous>, transform_indices = @transform_6, window_bounds = array<i64: 3, 64, 64>}, {pipeline_mode = #tpu.pipeline_mode<synchronous>, transform_indices = @transform_7, window_bounds = array<i64: 1, 64>}, {pipeline_mode = #tpu.pipeline_mode<synchronous>, transform_indices = @transform_8, window_bounds = array<i64: 1, 64>}, {pipeline_mode = #tpu.pipeline_mode<synchronous>, transform_indices = @transform_9, window_bounds = array<i64: 1, 64>}, {transform_indices = @transform_10, window_bounds = array<i64: 1, 8, 128>}]} {
    %c0 = arith.constant 0 : index
    %c0_0 = arith.constant 0 : index
    %0 = vector.load %arg8[%c0, %c0_0] : memref<1x64xf32, #tpu.memory_space<vmem>>, vector<1x64xf32>
    %c0_1 = arith.constant 0 : index
    %c1 = arith.constant 1 : index
    %c0_2 = arith.constant 0 : index
    %1 = vector.load %arg1[%c0_1, %c1, %c0_2] : memref<1x10x64xbf16, #tpu.memory_space<vmem>>, vector<1x8x64xbf16>
    %2 = vector.shape_cast %1 : vector<1x8x64xbf16> to vector<8x64xbf16>
    %c1_3 = arith.constant 1 : index
    %c0_4 = arith.constant 0 : index
    %c0_5 = arith.constant 0 : index
    %3 = vector.load %arg4[%c1_3, %c0_4, %c0_5] : memref<4x64x64xbf16, #tpu.memory_space<vmem>>, vector<1x64x64xbf16>
    %4 = vector.shape_cast %3 : vector<1x64x64xbf16> to vector<64x64xbf16>
    %cst = arith.constant dense<0.000000e+00> : vector<8x64xf32>
    %5 = tpu.matmul %2, %4, %cst {dimension_numbers = #tpu.dot_dimension_numbers<[1], [0], [0], [1], [0, 0, 1, 1], [], []>} : vector<8x64xbf16>, vector<64x64xbf16>, vector<8x64xf32> -> vector<8x64xf32>
    %6 = vector.broadcast %0 : vector<1x64xf32> to vector<8x64xf32>
    %7 = arith.addf %6, %5 : vector<8x64xf32>
    %c0_6 = arith.constant 0 : index
    %c0_7 = arith.constant 0 : index
    %c0_8 = arith.constant 0 : index
    %8 = vector.load %arg1[%c0_6, %c0_7, %c0_8] : memref<1x10x64xbf16, #tpu.memory_space<vmem>>, vector<1x8x64xbf16>
    %9 = vector.shape_cast %8 : vector<1x8x64xbf16> to vector<8x64xbf16>
    %c3 = arith.constant 3 : index
    %c0_9 = arith.constant 0 : index
    %c0_10 = arith.constant 0 : index
    %10 = vector.load %arg4[%c3, %c0_9, %c0_10] : memref<4x64x64xbf16, #tpu.memory_space<vmem>>, vector<1x64x64xbf16>
    %11 = vector.shape_cast %10 : vector<1x64x64xbf16> to vector<64x64xbf16>
    %cst_11 = arith.constant dense<0.000000e+00> : vector<8x64xf32>
    %12 = tpu.matmul %9, %11, %cst_11 {dimension_numbers = #tpu.dot_dimension_numbers<[1], [0], [0], [1], [0, 0, 1, 1], [], []>} : vector<8x64xbf16>, vector<64x64xbf16>, vector<8x64xf32> -> vector<8x64xf32>
    %13 = arith.addf %7, %12 : vector<8x64xf32>
    %c0_12 = arith.constant 0 : index
    %c2 = arith.constant 2 : index
    %c0_13 = arith.constant 0 : index
    %14 = vector.load %arg1[%c0_12, %c2, %c0_13] : memref<1x10x64xbf16, #tpu.memory_space<vmem>>, vector<1x8x64xbf16>
    %15 = vector.shape_cast %14 : vector<1x8x64xbf16> to vector<8x64xbf16>
    %c0_14 = arith.constant 0 : index
    %c0_15 = arith.constant 0 : index
    %c0_16 = arith.constant 0 : index
    %16 = vector.load %arg4[%c0_14, %c0_15, %c0_16] : memref<4x64x64xbf16, #tpu.memory_space<vmem>>, vector<1x64x64xbf16>
    %17 = vector.shape_cast %16 : vector<1x64x64xbf16> to vector<64x64xbf16>
    %cst_17 = arith.constant dense<0.000000e+00> : vector<8x64xf32>
    %18 = tpu.matmul %15, %17, %cst_17 {dimension_numbers = #tpu.dot_dimension_numbers<[1], [0], [0], [1], [0, 0, 1, 1], [], []>} : vector<8x64xbf16>, vector<64x64xbf16>, vector<8x64xf32> -> vector<8x64xf32>
    %19 = vector.broadcast %0 : vector<1x64xf32> to vector<8x64xf32>
    %20 = arith.addf %19, %18 : vector<8x64xf32>
    %c2_18 = arith.constant 2 : index
    %c0_19 = arith.constant 0 : index
    %c0_20 = arith.constant 0 : index
    %21 = vector.load %arg4[%c2_18, %c0_19, %c0_20] : memref<4x64x64xbf16, #tpu.memory_space<vmem>>, vector<1x64x64xbf16>
    %22 = vector.shape_cast %21 : vector<1x64x64xbf16> to vector<64x64xbf16>
    %cst_21 = arith.constant dense<0.000000e+00> : vector<8x64xf32>
    %23 = tpu.matmul %2, %22, %cst_21 {dimension_numbers = #tpu.dot_dimension_numbers<[1], [0], [0], [1], [0, 0, 1, 1], [], []>} : vector<8x64xbf16>, vector<64x64xbf16>, vector<8x64xf32> -> vector<8x64xf32>
    %24 = arith.addf %20, %23 : vector<8x64xf32>
    %25 = arith.truncf %13 : vector<8x64xf32> to vector<8x64xbf16>
    %c0_22 = arith.constant 0 : index
    %c0_23 = arith.constant 0 : index
    %26 = vector.load %arg12[%c0_22, %c0_23] : memref<9x64xbf16, #tpu.memory_space<vmem>>, vector<8x64xbf16>
    tpu.vector_store %arg12[%c0_22, %c0_23], %25 {strides = array<i32>} : memref<9x64xbf16, #tpu.memory_space<vmem>>, vector<8x64xbf16>,
    %cst_24 = arith.constant 0.000000e+00 : bf16
    %27 = vector.broadcast %cst_24 : bf16 to vector<1x64xbf16>
    %c8 = arith.constant 8 : index
    %c0_25 = arith.constant 0 : index
    %28 = vector.load %arg12[%c8, %c0_25] : memref<9x64xbf16, #tpu.memory_space<vmem>>, vector<1x64xbf16>
    tpu.vector_store %arg12[%c8, %c0_25], %27 {strides = array<i32>} : memref<9x64xbf16, #tpu.memory_space<vmem>>, vector<1x64xbf16>,
    %cst_26 = arith.constant 0.000000e+00 : bf16
    %29 = vector.broadcast %cst_26 : bf16 to vector<1x64xbf16>
    %c0_27 = arith.constant 0 : index
    %c0_28 = arith.constant 0 : index
    %30 = vector.load %arg13[%c0_27, %c0_28] : memref<9x64xbf16, #tpu.memory_space<vmem>>, vector<1x64xbf16>
    tpu.vector_store %arg13[%c0_27, %c0_28], %29 {strides = array<i32>} : memref<9x64xbf16, #tpu.memory_space<vmem>>, vector<1x64xbf16>,
    %31 = arith.truncf %24 : vector<8x64xf32> to vector<8x64xbf16>
    %c1_29 = arith.constant 1 : index
    %c0_30 = arith.constant 0 : index
    %32 = vector.load %arg13[%c1_29, %c0_30] : memref<9x64xbf16, #tpu.memory_space<vmem>>, vector<8x64xbf16>
    tpu.vector_store %arg13[%c1_29, %c0_30], %31 {strides = array<i32>} : memref<9x64xbf16, #tpu.memory_space<vmem>>, vector<8x64xbf16>,
    %c0_31 = arith.constant 0 : index
    %c0_32 = arith.constant 0 : index
    %33 = vector.load %arg9[%c0_31, %c0_32] : memref<1x64xf32, #tpu.memory_space<vmem>>, vector<1x64xf32>
    %c0_33 = arith.constant 0 : index
    %c0_34 = arith.constant 0 : index
    %34 = vector.load %arg12[%c0_33, %c0_34] : memref<9x64xbf16, #tpu.memory_space<vmem>>, vector<8x64xbf16>
    %c1_35 = arith.constant 1 : index
    %c0_36 = arith.constant 0 : index
    %35 = vector.load %arg12[%c1_35, %c0_36] : memref<9x64xbf16, #tpu.memory_space<vmem>>, vector<8x64xbf16>
    %c0_37 = arith.constant 0 : index
    %c0_38 = arith.constant 0 : index
    %36 = vector.load %arg13[%c0_37, %c0_38] : memref<9x64xbf16, #tpu.memory_space<vmem>>, vector<8x64xbf16>
    %c1_39 = arith.constant 1 : index
    %c0_40 = arith.constant 0 : index
    %37 = vector.load %arg13[%c1_39, %c0_40] : memref<9x64xbf16, #tpu.memory_space<vmem>>, vector<8x64xbf16>
    %c0_41 = arith.constant 0 : index
    %c0_42 = arith.constant 0 : index
    %c0_43 = arith.constant 0 : index
    %38 = vector.load %arg2[%c0_41, %c0_42, %c0_43] : memref<1x9x64xbf16, #tpu.memory_space<vmem>>, vector<1x8x64xbf16>
    %39 = vector.shape_cast %38 : vector<1x8x64xbf16> to vector<8x64xbf16>
    %c0_44 = arith.constant 0 : index
    %c1_45 = arith.constant 1 : index
    %c0_46 = arith.constant 0 : index
    %40 = vector.load %arg2[%c0_44, %c1_45, %c0_46] : memref<1x9x64xbf16, #tpu.memory_space<vmem>>, vector<1x8x64xbf16>
    %41 = vector.shape_cast %40 : vector<1x8x64xbf16> to vector<8x64xbf16>
    %c0_47 = arith.constant 0 : index
    %c0_48 = arith.constant 0 : index
    %c0_49 = arith.constant 0 : index
    %42 = vector.load %arg3[%c0_47, %c0_48, %c0_49] : memref<1x9x64xbf16, #tpu.memory_space<vmem>>, vector<1x8x64xbf16>
    %43 = vector.shape_cast %42 : vector<1x8x64xbf16> to vector<8x64xbf16>
    %c0_50 = arith.constant 0 : index
    %c1_51 = arith.constant 1 : index
    %c0_52 = arith.constant 0 : index
    %44 = vector.load %arg3[%c0_50, %c1_51, %c0_52] : memref<1x9x64xbf16, #tpu.memory_space<vmem>>, vector<1x8x64xbf16>
    %45 = vector.shape_cast %44 : vector<1x8x64xbf16> to vector<8x64xbf16>
    %c0_53 = arith.constant 0 : index
    %c0_54 = arith.constant 0 : index
    %c0_55 = arith.constant 0 : index
    %46 = vector.load %arg5[%c0_53, %c0_54, %c0_55] : memref<3x64x64xbf16, #tpu.memory_space<vmem>>, vector<1x64x64xbf16>
    %47 = vector.shape_cast %46 : vector<1x64x64xbf16> to vector<64x64xbf16>
    %cst_56 = arith.constant dense<0.000000e+00> : vector<8x64xf32>
    %48 = tpu.matmul %36, %47, %cst_56 {dimension_numbers = #tpu.dot_dimension_numbers<[1], [0], [0], [1], [0, 0, 1, 1], [], []>} : vector<8x64xbf16>, vector<64x64xbf16>, vector<8x64xf32> -> vector<8x64xf32>
    %49 = vector.broadcast %33 : vector<1x64xf32> to vector<8x64xf32>
    %50 = arith.addf %49, %48 : vector<8x64xf32>
    %c1_57 = arith.constant 1 : index
    %c0_58 = arith.constant 0 : index
    %c0_59 = arith.constant 0 : index
    %51 = vector.load %arg5[%c1_57, %c0_58, %c0_59] : memref<3x64x64xbf16, #tpu.memory_space<vmem>>, vector<1x64x64xbf16>
    %52 = vector.shape_cast %51 : vector<1x64x64xbf16> to vector<64x64xbf16>
    %cst_60 = arith.constant dense<0.000000e+00> : vector<8x64xf32>
    %53 = tpu.matmul %34, %52, %cst_60 {dimension_numbers = #tpu.dot_dimension_numbers<[1], [0], [0], [1], [0, 0, 1, 1], [], []>} : vector<8x64xbf16>, vector<64x64xbf16>, vector<8x64xf32> -> vector<8x64xf32>
    %54 = arith.addf %50, %53 : vector<8x64xf32>
    %c2_61 = arith.constant 2 : index
    %c0_62 = arith.constant 0 : index
    %c0_63 = arith.constant 0 : index
    %55 = vector.load %arg5[%c2_61, %c0_62, %c0_63] : memref<3x64x64xbf16, #tpu.memory_space<vmem>>, vector<1x64x64xbf16>
    %56 = vector.shape_cast %55 : vector<1x64x64xbf16> to vector<64x64xbf16>
    %cst_64 = arith.constant dense<0.000000e+00> : vector<8x64xf32>
    %57 = tpu.matmul %37, %56, %cst_64 {dimension_numbers = #tpu.dot_dimension_numbers<[1], [0], [0], [1], [0, 0, 1, 1], [], []>} : vector<8x64xbf16>, vector<64x64xbf16>, vector<8x64xf32> -> vector<8x64xf32>
    %58 = arith.addf %54, %57 : vector<8x64xf32>
    %c0_65 = arith.constant 0 : index
    %c0_66 = arith.constant 0 : index
    %c0_67 = arith.constant 0 : index
    %59 = vector.load %arg6[%c0_65, %c0_66, %c0_67] : memref<3x64x64xbf16, #tpu.memory_space<vmem>>, vector<1x64x64xbf16>
    %60 = vector.shape_cast %59 : vector<1x64x64xbf16> to vector<64x64xbf16>
    %cst_68 = arith.constant dense<0.000000e+00> : vector<8x64xf32>
    %61 = tpu.matmul %43, %60, %cst_68 {dimension_numbers = #tpu.dot_dimension_numbers<[1], [0], [0], [1], [0, 0, 1, 1], [], []>} : vector<8x64xbf16>, vector<64x64xbf16>, vector<8x64xf32> -> vector<8x64xf32>
    %62 = arith.addf %58, %61 : vector<8x64xf32>
    %c1_69 = arith.constant 1 : index
    %c0_70 = arith.constant 0 : index
    %c0_71 = arith.constant 0 : index
    %63 = vector.load %arg6[%c1_69, %c0_70, %c0_71] : memref<3x64x64xbf16, #tpu.memory_space<vmem>>, vector<1x64x64xbf16>
    %64 = vector.shape_cast %63 : vector<1x64x64xbf16> to vector<64x64xbf16>
    %cst_72 = arith.constant dense<0.000000e+00> : vector<8x64xf32>
    %65 = tpu.matmul %39, %64, %cst_72 {dimension_numbers = #tpu.dot_dimension_numbers<[1], [0], [0], [1], [0, 0, 1, 1], [], []>} : vector<8x64xbf16>, vector<64x64xbf16>, vector<8x64xf32> -> vector<8x64xf32>
    %66 = arith.addf %62, %65 : vector<8x64xf32>
    %c2_73 = arith.constant 2 : index
    %c0_74 = arith.constant 0 : index
    %c0_75 = arith.constant 0 : index
    %67 = vector.load %arg6[%c2_73, %c0_74, %c0_75] : memref<3x64x64xbf16, #tpu.memory_space<vmem>>, vector<1x64x64xbf16>
    %68 = vector.shape_cast %67 : vector<1x64x64xbf16> to vector<64x64xbf16>
    %cst_76 = arith.constant dense<0.000000e+00> : vector<8x64xf32>
    %69 = tpu.matmul %45, %68, %cst_76 {dimension_numbers = #tpu.dot_dimension_numbers<[1], [0], [0], [1], [0, 0, 1, 1], [], []>} : vector<8x64xbf16>, vector<64x64xbf16>, vector<8x64xf32> -> vector<8x64xf32>
    %70 = arith.addf %66, %69 : vector<8x64xf32>
    %c0_77 = arith.constant 0 : index
    %c0_78 = arith.constant 0 : index
    %c0_79 = arith.constant 0 : index
    %71 = vector.load %arg5[%c0_77, %c0_78, %c0_79] : memref<3x64x64xbf16, #tpu.memory_space<vmem>>, vector<1x64x64xbf16>
    %72 = vector.shape_cast %71 : vector<1x64x64xbf16> to vector<64x64xbf16>
    %cst_80 = arith.constant dense<0.000000e+00> : vector<8x64xf32>
    %73 = tpu.matmul %34, %72, %cst_80 {dimension_numbers = #tpu.dot_dimension_numbers<[1], [0], [0], [1], [0, 0, 1, 1], [], []>} : vector<8x64xbf16>, vector<64x64xbf16>, vector<8x64xf32> -> vector<8x64xf32>
    %74 = vector.broadcast %33 : vector<1x64xf32> to vector<8x64xf32>
    %75 = arith.addf %74, %73 : vector<8x64xf32>
    %c1_81 = arith.constant 1 : index
    %c0_82 = arith.constant 0 : index
    %c0_83 = arith.constant 0 : index
    %76 = vector.load %arg5[%c1_81, %c0_82, %c0_83] : memref<3x64x64xbf16, #tpu.memory_space<vmem>>, vector<1x64x64xbf16>
    %77 = vector.shape_cast %76 : vector<1x64x64xbf16> to vector<64x64xbf16>
    %cst_84 = arith.constant dense<0.000000e+00> : vector<8x64xf32>
    %78 = tpu.matmul %37, %77, %cst_84 {dimension_numbers = #tpu.dot_dimension_numbers<[1], [0], [0], [1], [0, 0, 1, 1], [], []>} : vector<8x64xbf16>, vector<64x64xbf16>, vector<8x64xf32> -> vector<8x64xf32>
    %79 = arith.addf %75, %78 : vector<8x64xf32>
    %c2_85 = arith.constant 2 : index
    %c0_86 = arith.constant 0 : index
    %c0_87 = arith.constant 0 : index
    %80 = vector.load %arg5[%c2_85, %c0_86, %c0_87] : memref<3x64x64xbf16, #tpu.memory_space<vmem>>, vector<1x64x64xbf16>
    %81 = vector.shape_cast %80 : vector<1x64x64xbf16> to vector<64x64xbf16>
    %cst_88 = arith.constant dense<0.000000e+00> : vector<8x64xf32>
    %82 = tpu.matmul %35, %81, %cst_88 {dimension_numbers = #tpu.dot_dimension_numbers<[1], [0], [0], [1], [0, 0, 1, 1], [], []>} : vector<8x64xbf16>, vector<64x64xbf16>, vector<8x64xf32> -> vector<8x64xf32>
    %83 = arith.addf %79, %82 : vector<8x64xf32>
    %c0_89 = arith.constant 0 : index
    %c0_90 = arith.constant 0 : index
    %c0_91 = arith.constant 0 : index
    %84 = vector.load %arg6[%c0_89, %c0_90, %c0_91] : memref<3x64x64xbf16, #tpu.memory_space<vmem>>, vector<1x64x64xbf16>
    %85 = vector.shape_cast %84 : vector<1x64x64xbf16> to vector<64x64xbf16>
    %cst_92 = arith.constant dense<0.000000e+00> : vector<8x64xf32>
    %86 = tpu.matmul %39, %85, %cst_92 {dimension_numbers = #tpu.dot_dimension_numbers<[1], [0], [0], [1], [0, 0, 1, 1], [], []>} : vector<8x64xbf16>, vector<64x64xbf16>, vector<8x64xf32> -> vector<8x64xf32>
    %87 = arith.addf %83, %86 : vector<8x64xf32>
    %c1_93 = arith.constant 1 : index
    %c0_94 = arith.constant 0 : index
    %c0_95 = arith.constant 0 : index
    %88 = vector.load %arg6[%c1_93, %c0_94, %c0_95] : memref<3x64x64xbf16, #tpu.memory_space<vmem>>, vector<1x64x64xbf16>
    %89 = vector.shape_cast %88 : vector<1x64x64xbf16> to vector<64x64xbf16>
    %cst_96 = arith.constant dense<0.000000e+00> : vector<8x64xf32>
    %90 = tpu.matmul %45, %89, %cst_96 {dimension_numbers = #tpu.dot_dimension_numbers<[1], [0], [0], [1], [0, 0, 1, 1], [], []>} : vector<8x64xbf16>, vector<64x64xbf16>, vector<8x64xf32> -> vector<8x64xf32>
    %91 = arith.addf %87, %90 : vector<8x64xf32>
    %c2_97 = arith.constant 2 : index
    %c0_98 = arith.constant 0 : index
    %c0_99 = arith.constant 0 : index
    %92 = vector.load %arg6[%c2_97, %c0_98, %c0_99] : memref<3x64x64xbf16, #tpu.memory_space<vmem>>, vector<1x64x64xbf16>
    %93 = vector.shape_cast %92 : vector<1x64x64xbf16> to vector<64x64xbf16>
    %cst_100 = arith.constant dense<0.000000e+00> : vector<8x64xf32>
    %94 = tpu.matmul %41, %93, %cst_100 {dimension_numbers = #tpu.dot_dimension_numbers<[1], [0], [0], [1], [0, 0, 1, 1], [], []>} : vector<8x64xbf16>, vector<64x64xbf16>, vector<8x64xf32> -> vector<8x64xf32>
    %95 = arith.addf %91, %94 : vector<8x64xf32>
    %cst_101 = arith.constant 0.000000e+00 : f32
    %96 = vector.broadcast %cst_101 : f32 to vector<8x64xf32>
    %97 = arith.maximumf %70, %96 : vector<8x64xf32>
    %98 = arith.truncf %97 : vector<8x64xf32> to vector<8x64xbf16>
    %c0_102 = arith.constant 0 : index
    %c0_103 = arith.constant 0 : index
    %99 = vector.load %arg14[%c0_102, %c0_103] : memref<9x64xbf16, #tpu.memory_space<vmem>>, vector<8x64xbf16>
    tpu.vector_store %arg14[%c0_102, %c0_103], %98 {strides = array<i32>} : memref<9x64xbf16, #tpu.memory_space<vmem>>, vector<8x64xbf16>,
    %cst_104 = arith.constant 0.000000e+00 : bf16
    %100 = vector.broadcast %cst_104 : bf16 to vector<1x64xbf16>
    %c8_105 = arith.constant 8 : index
    %c0_106 = arith.constant 0 : index
    %101 = vector.load %arg14[%c8_105, %c0_106] : memref<9x64xbf16, #tpu.memory_space<vmem>>, vector<1x64xbf16>
    tpu.vector_store %arg14[%c8_105, %c0_106], %100 {strides = array<i32>} : memref<9x64xbf16, #tpu.memory_space<vmem>>, vector<1x64xbf16>,
    %cst_107 = arith.constant 0.000000e+00 : bf16
    %102 = vector.broadcast %cst_107 : bf16 to vector<1x64xbf16>
    %c0_108 = arith.constant 0 : index
    %c0_109 = arith.constant 0 : index
    %103 = vector.load %arg15[%c0_108, %c0_109] : memref<9x64xbf16, #tpu.memory_space<vmem>>, vector<1x64xbf16>
    tpu.vector_store %arg15[%c0_108, %c0_109], %102 {strides = array<i32>} : memref<9x64xbf16, #tpu.memory_space<vmem>>, vector<1x64xbf16>,
    %cst_110 = arith.constant 0.000000e+00 : f32
    %104 = vector.broadcast %cst_110 : f32 to vector<8x64xf32>
    %105 = arith.maximumf %95, %104 : vector<8x64xf32>
    %106 = arith.truncf %105 : vector<8x64xf32> to vector<8x64xbf16>
    %c1_111 = arith.constant 1 : index
    %c0_112 = arith.constant 0 : index
    %107 = vector.load %arg15[%c1_111, %c0_112] : memref<9x64xbf16, #tpu.memory_space<vmem>>, vector<8x64xbf16>
    tpu.vector_store %arg15[%c1_111, %c0_112], %106 {strides = array<i32>} : memref<9x64xbf16, #tpu.memory_space<vmem>>, vector<8x64xbf16>,
    %c0_113 = arith.constant 0 : index
    %c0_114 = arith.constant 0 : index
    %108 = vector.load %arg10[%c0_113, %c0_114] : memref<1x64xf32, #tpu.memory_space<vmem>>, vector<1x64xf32>
    %c0_115 = arith.constant 0 : index
    %c0_116 = arith.constant 0 : index
    %109 = vector.load %arg14[%c0_115, %c0_116] : memref<9x64xbf16, #tpu.memory_space<vmem>>, vector<8x64xbf16>
    %c1_117 = arith.constant 1 : index
    %c0_118 = arith.constant 0 : index
    %110 = vector.load %arg14[%c1_117, %c0_118] : memref<9x64xbf16, #tpu.memory_space<vmem>>, vector<8x64xbf16>
    %c0_119 = arith.constant 0 : index
    %c0_120 = arith.constant 0 : index
    %111 = vector.load %arg15[%c0_119, %c0_120] : memref<9x64xbf16, #tpu.memory_space<vmem>>, vector<8x64xbf16>
    %c1_121 = arith.constant 1 : index
    %c0_122 = arith.constant 0 : index
    %112 = vector.load %arg15[%c1_121, %c0_122] : memref<9x64xbf16, #tpu.memory_space<vmem>>, vector<8x64xbf16>
    %c0_123 = arith.constant 0 : index
    %c0_124 = arith.constant 0 : index
    %c0_125 = arith.constant 0 : index
    %113 = vector.load %arg7[%c0_123, %c0_124, %c0_125] : memref<3x64x64xbf16, #tpu.memory_space<vmem>>, vector<1x64x64xbf16>
    %114 = vector.shape_cast %113 : vector<1x64x64xbf16> to vector<64x64xbf16>
    %cst_126 = arith.constant dense<0.000000e+00> : vector<8x64xf32>
    %115 = tpu.matmul %111, %114, %cst_126 {dimension_numbers = #tpu.dot_dimension_numbers<[1], [0], [0], [1], [0, 0, 1, 1], [], []>} : vector<8x64xbf16>, vector<64x64xbf16>, vector<8x64xf32> -> vector<8x64xf32>
    %116 = vector.broadcast %108 : vector<1x64xf32> to vector<8x64xf32>
    %117 = arith.addf %116, %115 : vector<8x64xf32>
    %c1_127 = arith.constant 1 : index
    %c0_128 = arith.constant 0 : index
    %c0_129 = arith.constant 0 : index
    %118 = vector.load %arg7[%c1_127, %c0_128, %c0_129] : memref<3x64x64xbf16, #tpu.memory_space<vmem>>, vector<1x64x64xbf16>
    %119 = vector.shape_cast %118 : vector<1x64x64xbf16> to vector<64x64xbf16>
    %cst_130 = arith.constant dense<0.000000e+00> : vector<8x64xf32>
    %120 = tpu.matmul %109, %119, %cst_130 {dimension_numbers = #tpu.dot_dimension_numbers<[1], [0], [0], [1], [0, 0, 1, 1], [], []>} : vector<8x64xbf16>, vector<64x64xbf16>, vector<8x64xf32> -> vector<8x64xf32>
    %121 = arith.addf %117, %120 : vector<8x64xf32>
    %c2_131 = arith.constant 2 : index
    %c0_132 = arith.constant 0 : index
    %c0_133 = arith.constant 0 : index
    %122 = vector.load %arg7[%c2_131, %c0_132, %c0_133] : memref<3x64x64xbf16, #tpu.memory_space<vmem>>, vector<1x64x64xbf16>
    %123 = vector.shape_cast %122 : vector<1x64x64xbf16> to vector<64x64xbf16>
    %cst_134 = arith.constant dense<0.000000e+00> : vector<8x64xf32>
    %124 = tpu.matmul %112, %123, %cst_134 {dimension_numbers = #tpu.dot_dimension_numbers<[1], [0], [0], [1], [0, 0, 1, 1], [], []>} : vector<8x64xbf16>, vector<64x64xbf16>, vector<8x64xf32> -> vector<8x64xf32>
    %125 = arith.addf %121, %124 : vector<8x64xf32>
    %c0_135 = arith.constant 0 : index
    %c0_136 = arith.constant 0 : index
    %c0_137 = arith.constant 0 : index
    %126 = vector.load %arg7[%c0_135, %c0_136, %c0_137] : memref<3x64x64xbf16, #tpu.memory_space<vmem>>, vector<1x64x64xbf16>
    %127 = vector.shape_cast %126 : vector<1x64x64xbf16> to vector<64x64xbf16>
    %cst_138 = arith.constant dense<0.000000e+00> : vector<8x64xf32>
    %128 = tpu.matmul %109, %127, %cst_138 {dimension_numbers = #tpu.dot_dimension_numbers<[1], [0], [0], [1], [0, 0, 1, 1], [], []>} : vector<8x64xbf16>, vector<64x64xbf16>, vector<8x64xf32> -> vector<8x64xf32>
    %129 = vector.broadcast %108 : vector<1x64xf32> to vector<8x64xf32>
    %130 = arith.addf %129, %128 : vector<8x64xf32>
    %c1_139 = arith.constant 1 : index
    %c0_140 = arith.constant 0 : index
    %c0_141 = arith.constant 0 : index
    %131 = vector.load %arg7[%c1_139, %c0_140, %c0_141] : memref<3x64x64xbf16, #tpu.memory_space<vmem>>, vector<1x64x64xbf16>
    %132 = vector.shape_cast %131 : vector<1x64x64xbf16> to vector<64x64xbf16>
    %cst_142 = arith.constant dense<0.000000e+00> : vector<8x64xf32>
    %133 = tpu.matmul %112, %132, %cst_142 {dimension_numbers = #tpu.dot_dimension_numbers<[1], [0], [0], [1], [0, 0, 1, 1], [], []>} : vector<8x64xbf16>, vector<64x64xbf16>, vector<8x64xf32> -> vector<8x64xf32>
    %134 = arith.addf %130, %133 : vector<8x64xf32>
    %c2_143 = arith.constant 2 : index
    %c0_144 = arith.constant 0 : index
    %c0_145 = arith.constant 0 : index
    %135 = vector.load %arg7[%c2_143, %c0_144, %c0_145] : memref<3x64x64xbf16, #tpu.memory_space<vmem>>, vector<1x64x64xbf16>
    %136 = vector.shape_cast %135 : vector<1x64x64xbf16> to vector<64x64xbf16>
    %cst_146 = arith.constant dense<0.000000e+00> : vector<8x64xf32>
    %137 = tpu.matmul %110, %136, %cst_146 {dimension_numbers = #tpu.dot_dimension_numbers<[1], [0], [0], [1], [0, 0, 1, 1], [], []>} : vector<8x64xbf16>, vector<64x64xbf16>, vector<8x64xf32> -> vector<8x64xf32>
    %138 = arith.addf %134, %137 : vector<8x64xf32>
    %cst_147 = arith.constant 0.000000e+00 : f32
    %139 = vector.broadcast %cst_147 : f32 to vector<8x64xf32>
    %140 = arith.maximumf %125, %139 : vector<8x64xf32>
    %cst_148 = arith.constant 0.000000e+00 : f32
    %141 = vector.broadcast %cst_148 : f32 to vector<8x64xf32>
    %142 = arith.maximumf %138, %141 : vector<8x64xf32>
    %143 = tpu.concatenate %140, %142 in 1 : vector<8x64xf32>, vector<8x64xf32> -> vector<8x128xf32>
    %c0_149 = arith.constant 0 : index
    %c0_150 = arith.constant 0 : index
    %c0_151 = arith.constant 0 : index
    %144 = vector.load %arg11[%c0_149, %c0_150, %c0_151] : memref<1x8x128xf32, #tpu.memory_space<vmem>>, vector<1x8x128xf32>
    %145 = vector.shape_cast %144 : vector<1x8x128xf32> to vector<8x128xf32>
    %146 = vector.shape_cast %143 : vector<8x128xf32> to vector<1x8x128xf32>
    tpu.vector_store %arg11[%c0_149, %c0_150, %c0_151], %146 {strides = array<i32>} : memref<1x8x128xf32, #tpu.memory_space<vmem>>, vector<1x8x128xf32>,
    return
  }
  func.func @transform_0(%arg0: i32) -> (i32, i32, i32) {
    %c0_i32 = arith.constant 0 : i32
    %c0_i32_0 = arith.constant 0 : i32
    %c0_i32_1 = arith.constant 0 : i32
    return %arg0, %c0_i32, %c0_i32_0 : i32, i32, i32
  }
  func.func @transform_1(%arg0: i32) -> (i32, i32, i32) {
    %c0_i32 = arith.constant 0 : i32
    %c0_i32_0 = arith.constant 0 : i32
    %c0_i32_1 = arith.constant 0 : i32
    return %arg0, %c0_i32, %c0_i32_0 : i32, i32, i32
  }
  func.func @transform_2(%arg0: i32) -> (i32, i32, i32) {
    %c0_i32 = arith.constant 0 : i32
    %c0_i32_0 = arith.constant 0 : i32
    %c0_i32_1 = arith.constant 0 : i32
    return %arg0, %c0_i32, %c0_i32_0 : i32, i32, i32
  }
  func.func @transform_3(%arg0: i32) -> (i32, i32, i32) {
    %c0_i32 = arith.constant 0 : i32
    %c0_i32_0 = arith.constant 0 : i32
    %c0_i32_1 = arith.constant 0 : i32
    %c0_i32_2 = arith.constant 0 : i32
    return %c0_i32, %c0_i32_0, %c0_i32_1 : i32, i32, i32
  }
  func.func @transform_4(%arg0: i32) -> (i32, i32, i32) {
    %c0_i32 = arith.constant 0 : i32
    %c0_i32_0 = arith.constant 0 : i32
    %c0_i32_1 = arith.constant 0 : i32
    %c0_i32_2 = arith.constant 0 : i32
    return %c0_i32, %c0_i32_0, %c0_i32_1 : i32, i32, i32
  }
  func.func @transform_5(%arg0: i32) -> (i32, i32, i32) {
    %c0_i32 = arith.constant 0 : i32
    %c0_i32_0 = arith.constant 0 : i32
    %c0_i32_1 = arith.constant 0 : i32
    %c0_i32_2 = arith.constant 0 : i32
    return %c0_i32, %c0_i32_0, %c0_i32_1 : i32, i32, i32
  }
  func.func @transform_6(%arg0: i32) -> (i32, i32, i32) {
    %c0_i32 = arith.constant 0 : i32
    %c0_i32_0 = arith.constant 0 : i32
    %c0_i32_1 = arith.constant 0 : i32
    %c0_i32_2 = arith.constant 0 : i32
    return %c0_i32, %c0_i32_0, %c0_i32_1 : i32, i32, i32
  }
  func.func @transform_7(%arg0: i32) -> (i32, i32) {
    %c0_i32 = arith.constant 0 : i32
    %c0_i32_0 = arith.constant 0 : i32
    %c0_i32_1 = arith.constant 0 : i32
    return %c0_i32, %c0_i32_0 : i32, i32
  }
  func.func @transform_8(%arg0: i32) -> (i32, i32) {
    %c0_i32 = arith.constant 0 : i32
    %c0_i32_0 = arith.constant 0 : i32
    %c0_i32_1 = arith.constant 0 : i32
    return %c0_i32, %c0_i32_0 : i32, i32
  }
  func.func @transform_9(%arg0: i32) -> (i32, i32) {
    %c0_i32 = arith.constant 0 : i32
    %c0_i32_0 = arith.constant 0 : i32
    %c0_i32_1 = arith.constant 0 : i32
    return %c0_i32, %c0_i32_0 : i32, i32
  }
  func.func @transform_10(%arg0: i32) -> (i32, i32, i32) {
    %c0_i32 = arith.constant 0 : i32
    %c0_i32_0 = arith.constant 0 : i32
    %c0_i32_1 = arith.constant 0 : i32
    return %arg0, %c0_i32, %c0_i32_0 : i32, i32, i32
  }
}

</mosaic_0001>

<llo_original>
// kernel: unet_up_origin_forward.1
$region0: #{unet_up_origin_forward.1}
  #allocation0 [shape = 'u32[]', space=smem, size = 0x4, offset = 0x4, fixed_abs, tag = 'smem constant byte address 0x4 - core index']
  #allocation1 [shape = 'u32[144,128]{1,0:T(1,128)}', space=vmem, size = 0x12000, scoped, tag = 'internal scratch']
  #allocation2 [shape = 'bf16[9,64]{1,0:T(8,128)(2,1)}', space=vmem, size = 0x1000, scoped, tag = 'scratch operand']
  #allocation3 [shape = 'bf16[9,64]{1,0:T(8,128)(2,1)}', space=vmem, size = 0x1000, scoped, tag = 'scratch operand']
  #allocation4 [shape = 'bf16[9,64]{1,0:T(8,128)(2,1)}', space=vmem, size = 0x1000, scoped, tag = 'scratch operand']
  #allocation5 [shape = 'bf16[9,64]{1,0:T(8,128)(2,1)}', space=vmem, size = 0x1000, scoped, tag = 'scratch operand']
  %s0 = inlined_call_operand.vmem [shape: bf16[2,10,64], index: 0, kind: input, shape index: {}]
  %s1 = inlined_call_operand.vmem [shape: bf16[2,9,64], index: 1, kind: input, shape index: {}]
  %s2 = inlined_call_operand.vmem [shape: bf16[2,9,64], index: 2, kind: input, shape index: {}]
  %s3 = inlined_call_operand.vmem [shape: bf16[4,64,64], index: 3, kind: input, shape index: {}]
  %s4 = inlined_call_operand.vmem [shape: bf16[3,64,64], index: 4, kind: input, shape index: {}]
  %s5 = inlined_call_operand.vmem [shape: bf16[3,64,64], index: 5, kind: input, shape index: {}]
  %s6 = inlined_call_operand.vmem [shape: bf16[3,64,64], index: 6, kind: input, shape index: {}]
  %s7 = inlined_call_operand.vmem [shape: f32[1,64], index: 7, kind: input, shape index: {}]
  %s8 = inlined_call_operand.vmem [shape: f32[1,64], index: 8, kind: input, shape index: {}]
  %s9 = inlined_call_operand.vmem [shape: f32[1,64], index: 9, kind: input, shape index: {}]
  %s10 = inlined_call_operand.vmem [shape: f32[2,8,128], index: 10, kind: output, shape index: {}]
  %s11 = sld [smem:[#allocation0]]
  $region73: #{unet_up_origin_forward.1} parent=0
    _
  %s13 = ssub.s32 1, %s11
  %s14 = scalar_select 0, %s13, %s11
  loop: start=0, step=1, limit=4
  $region2: #{unet_up_origin_forward.1} parent=0 // loop_pre_header
    _
  $region3: #{unet_up_origin_forward.1} parent=0 // loop_header
    %s16 = sphi 0, %s20
    %p17 = scmp.ge.s32.totalorder %s16, 4
    %s26 = sphi 0, %s28
    %s29 = sphi 0, %s26
    %s30 = sphi 0, %s29
    %s46 = sphi 0, %s30
    %s52 = sphi 0, %s54
    %s55 = sphi 0, %s52
    %s56 = sphi 0, %s55
    %s72 = sphi 0, %s56
    %s78 = sphi 0, %s80
    %s81 = sphi 0, %s78
    %s82 = sphi 0, %s81
    %s98 = sphi 0, %s82
    %s102 = sphi 0, %s102
    %s104 = sphi 0, %s102
    %s105 = sphi 0, %s104
    %s119 = sphi 0, %s105
    %s123 = sphi 0, %s123
    %s125 = sphi 0, %s123
    %s126 = sphi 0, %s125
    %s140 = sphi 0, %s126
    %s144 = sphi 0, %s144
    %s146 = sphi 0, %s144
    %s147 = sphi 0, %s146
    %s161 = sphi 0, %s147
    %s165 = sphi 0, %s165
    %s167 = sphi 0, %s165
    %s168 = sphi 0, %s167
    %s182 = sphi 0, %s168
    %s186 = sphi 0, %s186
    %s188 = sphi 0, %s186
    %s189 = sphi 0, %s188
    %s203 = sphi 0, %s189
    %s207 = sphi 0, %s207
    %s209 = sphi 0, %s207
    %s210 = sphi 0, %s209
    %s224 = sphi 0, %s210
    %s228 = sphi 0, %s228
    %s230 = sphi 0, %s228
    %s231 = sphi 0, %s230
    %s245 = sphi 0, %s231
    %s251 = sphi 0, %s253
    %s254 = sphi 0, %s251
    %s255 = sphi 0, %s254
    %s271 = sphi 0, %s255
  $region4: #{unet_up_origin_forward.1} parent=0 // loop_header_branch
    %19 = sbr.rel (%p17) target = $region8
  $region5: #{unet_up_origin_forward.1} parent=0 // loop_body
    %s21 = ssub.s32 %s16, 1
    %s22 = ssub.s32 %s16, 2
    %s23 = sadd.s32 %s16, 1
    %s24 = ssub.s32 %s16, %s23
    %p25 = scmp.eq.s32.totalorder %s24, 0
    %s27 = sadd.s32 %s26, 1
    %s28 = scalar_select %p25, %s26, %s27
    %p31 = pneg %p25
    %p32 = scmp.eq.s32.totalorder %s16, 1
    %p33 = por %p31, %p32
    %p34 = scmp.ne.s32.totalorder %s26, %s29
    %p35 = scmp.eq.s32.totalorder %s16, 0
    %p36 = por %p34, %p35
    %p37 = scmp.ne.s32.totalorder %s26, %s29
    %p38 = scmp.eq.s32.totalorder %s21, 1
    %p39 = por %p37, %p38
    %p40 = scmp.ne.s32.totalorder %s29, %s30
    %p41 = scmp.eq.s32.totalorder %s21, 0
    %p42 = por %p40, %p41
    %p43 = scmp.ne.s32.totalorder %s29, %s30
    %p44 = scmp.eq.s32.totalorder %s22, 1
    %p45 = por %p43, %p44
    %p47 = scmp.ne.s32.totalorder %s30, %s46
    %p48 = scmp.eq.s32.totalorder %s22, 0
    %p49 = por %p47, %p48
    %s50 = ssub.s32 %s16, %s23
    %p51 = scmp.eq.s32.totalorder %s50, 0
    %s53 = sadd.s32 %s52, 1
    %s54 = scalar_select %p51, %s52, %s53
    %p57 = pneg %p51
    %p58 = scmp.eq.s32.totalorder %s16, 1
    %p59 = por %p57, %p58
    %p60 = scmp.ne.s32.totalorder %s52, %s55
    %p61 = scmp.eq.s32.totalorder %s16, 0
    %p62 = por %p60, %p61
    %p63 = scmp.ne.s32.totalorder %s52, %s55
    %p64 = scmp.eq.s32.totalorder %s21, 1
    %p65 = por %p63, %p64
    %p66 = scmp.ne.s32.totalorder %s55, %s56
    %p67 = scmp.eq.s32.totalorder %s21, 0
    %p68 = por %p66, %p67
    %p69 = scmp.ne.s32.totalorder %s55, %s56
    %p70 = scmp.eq.s32.totalorder %s22, 1
    %p71 = por %p69, %p70
    %p73 = scmp.ne.s32.totalorder %s56, %s72
    %p74 = scmp.eq.s32.totalorder %s22, 0
    %p75 = por %p73, %p74
    %s76 = ssub.s32 %s16, %s23
    %p77 = scmp.eq.s32.totalorder %s76, 0
    %s79 = sadd.s32 %s78, 1
    %s80 = scalar_select %p77, %s78, %s79
    %p83 = pneg %p77
    %p84 = scmp.eq.s32.totalorder %s16, 1
    %p85 = por %p83, %p84
    %p86 = scmp.ne.s32.totalorder %s78, %s81
    %p87 = scmp.eq.s32.totalorder %s16, 0
    %p88 = por %p86, %p87
    %p89 = scmp.ne.s32.totalorder %s78, %s81
    %p90 = scmp.eq.s32.totalorder %s21, 1
    %p91 = por %p89, %p90
    %p92 = scmp.ne.s32.totalorder %s81, %s82
    %p93 = scmp.eq.s32.totalorder %s21, 0
    %p94 = por %p92, %p93
    %p95 = scmp.ne.s32.totalorder %s81, %s82
    %p96 = scmp.eq.s32.totalorder %s22, 1
    %p97 = por %p95, %p96
    %p99 = scmp.ne.s32.totalorder %s82, %s98
    %p100 = scmp.eq.s32.totalorder %s22, 0
    %p101 = por %p99, %p100
    %s103 = sadd.s32 %s102, 1
    %p106 = scmp.eq.s32.totalorder %s16, 1
    %p107 = scmp.ne.s32.totalorder %s102, %s104
    %p108 = scmp.eq.s32.totalorder %s16, 0
    %p109 = por %p107, %p108
    %p110 = scmp.ne.s32.totalorder %s102, %s104
    %p111 = scmp.eq.s32.totalorder %s21, 1
    %p112 = por %p110, %p111
    %p113 = scmp.ne.s32.totalorder %s104, %s105
    %p114 = scmp.eq.s32.totalorder %s21, 0
    %p115 = por %p113, %p114
    %p116 = scmp.ne.s32.totalorder %s104, %s105
    %p117 = scmp.eq.s32.totalorder %s22, 1
    %p118 = por %p116, %p117
    %p120 = scmp.ne.s32.totalorder %s105, %s119
    %p121 = scmp.eq.s32.totalorder %s22, 0
    %p122 = por %p120, %p121
    %s124 = sadd.s32 %s123, 1
    %p127 = scmp.eq.s32.totalorder %s16, 1
    %p128 = scmp.ne.s32.totalorder %s123, %s125
    %p129 = scmp.eq.s32.totalorder %s16, 0
    %p130 = por %p128, %p129
    %p131 = scmp.ne.s32.totalorder %s123, %s125
    %p132 = scmp.eq.s32.totalorder %s21, 1
    %p133 = por %p131, %p132
    %p134 = scmp.ne.s32.totalorder %s125, %s126
    %p135 = scmp.eq.s32.totalorder %s21, 0
    %p136 = por %p134, %p135
    %p137 = scmp.ne.s32.totalorder %s125, %s126
    %p138 = scmp.eq.s32.totalorder %s22, 1
    %p139 = por %p137, %p138
    %p141 = scmp.ne.s32.totalorder %s126, %s140
    %p142 = scmp.eq.s32.totalorder %s22, 0
    %p143 = por %p141, %p142
    %s145 = sadd.s32 %s144, 1
    %p148 = scmp.eq.s32.totalorder %s16, 1
    %p149 = scmp.ne.s32.totalorder %s144, %s146
    %p150 = scmp.eq.s32.totalorder %s16, 0
    %p151 = por %p149, %p150
    %p152 = scmp.ne.s32.totalorder %s144, %s146
    %p153 = scmp.eq.s32.totalorder %s21, 1
    %p154 = por %p152, %p153
    %p155 = scmp.ne.s32.totalorder %s146, %s147
    %p156 = scmp.eq.s32.totalorder %s21, 0
    %p157 = por %p155, %p156
    %p158 = scmp.ne.s32.totalorder %s146, %s147
    %p159 = scmp.eq.s32.totalorder %s22, 1
    %p160 = por %p158, %p159
    %p162 = scmp.ne.s32.totalorder %s147, %s161
    %p163 = scmp.eq.s32.totalorder %s22, 0
    %p164 = por %p162, %p163
    %s166 = sadd.s32 %s165, 1
    %p169 = scmp.eq.s32.totalorder %s16, 1
    %p170 = scmp.ne.s32.totalorder %s165, %s167
    %p171 = scmp.eq.s32.totalorder %s16, 0
    %p172 = por %p170, %p171
    %p173 = scmp.ne.s32.totalorder %s165, %s167
    %p174 = scmp.eq.s32.totalorder %s21, 1
    %p175 = por %p173, %p174
    %p176 = scmp.ne.s32.totalorder %s167, %s168
    %p177 = scmp.eq.s32.totalorder %s21, 0
    %p178 = por %p176, %p177
    %p179 = scmp.ne.s32.totalorder %s167, %s168
    %p180 = scmp.eq.s32.totalorder %s22, 1
    %p181 = por %p179, %p180
    %p183 = scmp.ne.s32.totalorder %s168, %s182
    %p184 = scmp.eq.s32.totalorder %s22, 0
    %p185 = por %p183, %p184
    %s187 = sadd.s32 %s186, 1
    %p190 = scmp.eq.s32.totalorder %s16, 1
    %p191 = scmp.ne.s32.totalorder %s186, %s188
    %p192 = scmp.eq.s32.totalorder %s16, 0
    %p193 = por %p191, %p192
    %p194 = scmp.ne.s32.totalorder %s186, %s188
    %p195 = scmp.eq.s32.totalorder %s21, 1
    %p196 = por %p194, %p195
    %p197 = scmp.ne.s32.totalorder %s188, %s189
    %p198 = scmp.eq.s32.totalorder %s21, 0
    %p199 = por %p197, %p198
    %p200 = scmp.ne.s32.totalorder %s188, %s189
    %p201 = scmp.eq.s32.totalorder %s22, 1
    %p202 = por %p200, %p201
    %p204 = scmp.ne.s32.totalorder %s189, %s203
    %p205 = scmp.eq.s32.totalorder %s22, 0
    %p206 = por %p204, %p205
    %s208 = sadd.s32 %s207, 1
    %p211 = scmp.eq.s32.totalorder %s16, 1
    %p212 = scmp.ne.s32.totalorder %s207, %s209
    %p213 = scmp.eq.s32.totalorder %s16, 0
    %p214 = por %p212, %p213
    %p215 = scmp.ne.s32.totalorder %s207, %s209
    %p216 = scmp.eq.s32.totalorder %s21, 1
    %p217 = por %p215, %p216
    %p218 = scmp.ne.s32.totalorder %s209, %s210
    %p219 = scmp.eq.s32.totalorder %s21, 0
    %p220 = por %p218, %p219
    %p221 = scmp.ne.s32.totalorder %s209, %s210
    %p222 = scmp.eq.s32.totalorder %s22, 1
    %p223 = por %p221, %p222
    %p225 = scmp.ne.s32.totalorder %s210, %s224
    %p226 = scmp.eq.s32.totalorder %s22, 0
    %p227 = por %p225, %p226
    %s229 = sadd.s32 %s228, 1
    %p232 = scmp.eq.s32.totalorder %s16, 1
    %p233 = scmp.ne.s32.totalorder %s228, %s230
    %p234 = scmp.eq.s32.totalorder %s16, 0
    %p235 = por %p233, %p234
    %p236 = scmp.ne.s32.totalorder %s228, %s230
    %p237 = scmp.eq.s32.totalorder %s21, 1
    %p238 = por %p236, %p237
    %p239 = scmp.ne.s32.totalorder %s230, %s231
    %p240 = scmp.eq.s32.totalorder %s21, 0
    %p241 = por %p239, %p240
    %p242 = scmp.ne.s32.totalorder %s230, %s231
    %p243 = scmp.eq.s32.totalorder %s22, 1
    %p244 = por %p242, %p243
    %p246 = scmp.ne.s32.totalorder %s231, %s245
    %p247 = scmp.eq.s32.totalorder %s22, 0
    %p248 = por %p246, %p247
    %s249 = ssub.s32 %s16, %s23
    %p250 = scmp.eq.s32.totalorder %s249, 0
    %s252 = sadd.s32 %s251, 1
    %s253 = scalar_select %p250, %s251, %s252
    %p256 = pneg %p250
    %p257 = scmp.eq.s32.totalorder %s16, 1
    %p258 = por %p256, %p257
    %p259 = scmp.ne.s32.totalorder %s251, %s254
    %p260 = scmp.eq.s32.totalorder %s16, 0
    %p261 = por %p259, %p260
    %p262 = scmp.ne.s32.totalorder %s251, %s254
    %p263 = scmp.eq.s32.totalorder %s21, 1
    %p264 = por %p262, %p263
    %p265 = scmp.ne.s32.totalorder %s254, %s255
    %p266 = scmp.eq.s32.totalorder %s21, 0
    %p267 = por %p265, %p266
    %p268 = scmp.ne.s32.totalorder %s254, %s255
    %p269 = scmp.eq.s32.totalorder %s22, 1
    %p270 = por %p268, %p269
    %p272 = scmp.ne.s32.totalorder %s255, %s271
    %p273 = scmp.eq.s32.totalorder %s22, 0
    %p274 = por %p272, %p273
    %p275 = scmp.le.s32.totalorder 1, %s16
    %p276 = scmp.lt.s32.totalorder %s16, 3
    %p277 = pnand %p275, %p276
    %p278 = pneg %p277
    // Predicated region
    $region9: #{unet_up_origin_forward.1} parent=5 // pred_check
      _
    $region10: #{unet_up_origin_forward.1} parent=5 // pred_check_branch
      %280 = sbr.rel (%p277) target = $region12
    $region11: #{unet_up_origin_forward.1} parent=5 // pred_region
      %s281 = ssub.s32 %s16, 1
      // Predicated region
      $region13: #{unet_up_origin_forward.1} parent=11 // pred_check
        %p282 = pneg %p115
      $region14: #{unet_up_origin_forward.1} parent=11 // pred_check_branch
        %284 = sbr.rel (%p282) target = $region16
      $region15: #{unet_up_origin_forward.1} parent=11 // pred_region
        _
      $region16: #{unet_up_origin_forward.1} parent=11 // pred_fallthru
        _
      // Predicated region
      $region17: #{unet_up_origin_forward.1} parent=11 // pred_check
        %p285 = pneg %p136
      $region18: #{unet_up_origin_forward.1} parent=11 // pred_check_branch
        %287 = sbr.rel (%p285) target = $region20
      $region19: #{unet_up_origin_forward.1} parent=11 // pred_region
        _
      $region20: #{unet_up_origin_forward.1} parent=11 // pred_fallthru
        _
      // Predicated region
      $region21: #{unet_up_origin_forward.1} parent=11 // pred_check
        %p288 = pneg %p157
      $region22: #{unet_up_origin_forward.1} parent=11 // pred_check_branch
        %290 = sbr.rel (%p288) target = $region24
      $region23: #{unet_up_origin_forward.1} parent=11 // pred_region
        _
      $region24: #{unet_up_origin_forward.1} parent=11 // pred_fallthru
        _
      // Predicated region
      $region25: #{unet_up_origin_forward.1} parent=11 // pred_check
        %p291 = pneg %p178
      $region26: #{unet_up_origin_forward.1} parent=11 // pred_check_branch
        %293 = sbr.rel (%p291) target = $region28
      $region27: #{unet_up_origin_forward.1} parent=11 // pred_region
        _
      $region28: #{unet_up_origin_forward.1} parent=11 // pred_fallthru
        _
      // Predicated region
      $region29: #{unet_up_origin_forward.1} parent=11 // pred_check
        %p294 = pneg %p199
      $region30: #{unet_up_origin_forward.1} parent=11 // pred_check_branch
        %296 = sbr.rel (%p294) target = $region32
      $region31: #{unet_up_origin_forward.1} parent=11 // pred_region
        _
      $region32: #{unet_up_origin_forward.1} parent=11 // pred_fallthru
        _
      // Predicated region
      $region33: #{unet_up_origin_forward.1} parent=11 // pred_check
        %p297 = pneg %p220
      $region34: #{unet_up_origin_forward.1} parent=11 // pred_check_branch
        %299 = sbr.rel (%p297) target = $region36
      $region35: #{unet_up_origin_forward.1} parent=11 // pred_region
        _
      $region36: #{unet_up_origin_forward.1} parent=11 // pred_fallthru
        _
      // Predicated region
      $region37: #{unet_up_origin_forward.1} parent=11 // pred_check
        %p300 = pneg %p241
      $region38: #{unet_up_origin_forward.1} parent=11 // pred_check_branch
        %302 = sbr.rel (%p300) target = $region40
      $region39: #{unet_up_origin_forward.1} parent=11 // pred_region
        _
      $region40: #{unet_up_origin_forward.1} parent=11 // pred_fallthru
        _
    $region12: #{unet_up_origin_forward.1} parent=5 // pred_fallthru
      _
    %p303 = scmp.lt.s32.totalorder %s16, 2
    // Predicated region
    $region41: #{unet_up_origin_forward.1} parent=5 // pred_check
      %p304 = pneg %p303
    $region42: #{unet_up_origin_forward.1} parent=5 // pred_check_branch
      %306 = sbr.rel (%p304) target = $region44
    $region43: #{unet_up_origin_forward.1} parent=5 // pred_region
      // Predicated region
      $region45: #{unet_up_origin_forward.1} parent=43 // pred_check
        %p307 = pneg %p36
      $region46: #{unet_up_origin_forward.1} parent=43 // pred_check_branch
        %309 = sbr.rel (%p307) target = $region48
      $region47: #{unet_up_origin_forward.1} parent=43 // pred_region
        %p310 = scmp.lt.s32.totalorder %s16, 1
        %s311 = scalar_select %p310, %s16, 1
        %s312 = smul.addr %s311, 2
        %s313 = smul.addr %s312, 4
        %s314 = scalar_lea.vmem %s0, %s313
      $region48: #{unet_up_origin_forward.1} parent=43 // pred_fallthru
        _
      // Predicated region
      $region49: #{unet_up_origin_forward.1} parent=43 // pred_check
        %p315 = pneg %p62
      $region50: #{unet_up_origin_forward.1} parent=43 // pred_check_branch
        %317 = sbr.rel (%p315) target = $region52
      $region51: #{unet_up_origin_forward.1} parent=43 // pred_region
        %p318 = scmp.lt.s32.totalorder %s16, 1
        %s319 = scalar_select %p318, %s16, 1
        %s320 = smul.addr %s319, 2
        %s321 = smul.addr %s320, 4
        %s322 = scalar_lea.vmem %s1, %s321
      $region52: #{unet_up_origin_forward.1} parent=43 // pred_fallthru
        _
      // Predicated region
      $region53: #{unet_up_origin_forward.1} parent=43 // pred_check
        %p323 = pneg %p88
      $region54: #{unet_up_origin_forward.1} parent=43 // pred_check_branch
        %325 = sbr.rel (%p323) target = $region56
      $region55: #{unet_up_origin_forward.1} parent=43 // pred_region
        %p326 = scmp.lt.s32.totalorder %s16, 1
        %s327 = scalar_select %p326, %s16, 1
        %s328 = smul.addr %s327, 2
        %s329 = smul.addr %s328, 4
        %s330 = scalar_lea.vmem %s2, %s329
      $region56: #{unet_up_origin_forward.1} parent=43 // pred_fallthru
        _
    $region44: #{unet_up_origin_forward.1} parent=5 // pred_fallthru
      _
    %p331 = scmp.le.s32.totalorder 1, %s16
    %p332 = scmp.lt.s32.totalorder %s16, 3
    %p333 = pnand %p331, %p332
    %p334 = pneg %p333
    // Predicated region
    $region57: #{unet_up_origin_forward.1} parent=5 // pred_check
      _
    $region58: #{unet_up_origin_forward.1} parent=5 // pred_check_branch
      %336 = sbr.rel (%p333) target = $region60
    $region59: #{unet_up_origin_forward.1} parent=5 // pred_region
      %s337 = ssub.s32 %s16, 1
      %p338 = scmp.lt.s32.totalorder %s21, 1
      %s339 = scalar_select %p338, %s21, 1
      %s340 = smul.addr %s339, 2
      %s341 = smul.addr %s340, 4
      %s342 = scalar_lea.vmem %s0, %s341
      %p343 = pneg %p42
      %p344 = pneg %p39
      %p345 = scmp.lt.s32.totalorder %s21, 1
      %s346 = scalar_select %p345, %s21, 1
      %s347 = smul.addr %s346, 2
      %s348 = smul.addr %s347, 4
      %s349 = scalar_lea.vmem %s1, %s348
      %p350 = pneg %p68
      %p351 = pneg %p65
      %p352 = scmp.lt.s32.totalorder %s21, 1
      %s353 = scalar_select %p352, %s21, 1
      %s354 = smul.addr %s353, 2
      %s355 = smul.addr %s354, 4
      %s356 = scalar_lea.vmem %s2, %s355
      %p357 = pneg %p94
      %p358 = pneg %p91
      %p359 = pneg %p115
      %p360 = pneg %p112
      %p361 = pneg %p136
      %p362 = pneg %p133
      %p363 = pneg %p157
      %p364 = pneg %p154
      %p365 = pneg %p178
      %p366 = pneg %p175
      %p367 = pneg %p199
      %p368 = pneg %p196
      %p369 = pneg %p220
      %p370 = pneg %p217
      %p371 = pneg %p241
      %p372 = pneg %p238
      %p373 = pneg %p267
      %p374 = pneg %p264
      %p375 = scmp.lt.s32.totalorder %s21, 1
      %s376 = scalar_select %p375, %s21, 1
      %s377 = smul.addr %s376, 8
      %s378 = scalar_lea.vmem %s10, %s377
      %p379 = scmp.lt.s32.totalorder %s21, 1
      %s380 = scalar_select %p379, %s21, 1
      %s381 = smul.addr %s380, 2
      %s382 = smul.addr %s381, 4
      %s383 = scalar_lea.vmem %s0, %s382
      %p384 = scmp.lt.s32.totalorder %s21, 1
      %s385 = scalar_select %p384, %s21, 1
      %s386 = smul.addr %s385, 2
      %s387 = smul.addr %s386, 4
      %s388 = scalar_lea.vmem %s1, %s387
      %p389 = scmp.lt.s32.totalorder %s21, 1
      %s390 = scalar_select %p389, %s21, 1
      %s391 = smul.addr %s390, 2
      %s392 = smul.addr %s391, 4
      %s393 = scalar_lea.vmem %s2, %s392
      %p394 = scmp.lt.s32.totalorder %s21, 1
      %s395 = scalar_select %p394, %s21, 1
      %s396 = smul.addr %s395, 8
      %s397 = scalar_lea.vmem %s10, %s396
      %v399 = vld [vmem:[%s7] sm:$0x1]
      %v400 = vld [vmem:[%s383] sm:$0xf]
      %v401 = vld [vmem:[%s383 + $0x4] sm:$0x1]
      %s402 = scalar_lea.vmem %s3, 32
      %v403 = vld [vmem:[%s402] sm:$0xf]
      %v404 = vld [vmem:[%s402 + $0x4] sm:$0xf]
      %v405 = vld [vmem:[%s402 + $0x8] sm:$0xf]
      %v406 = vld [vmem:[%s402 + $0xc] sm:$0xf]
      %v407 = vld [vmem:[%s402 + $0x10] sm:$0xf]
      %v408 = vld [vmem:[%s402 + $0x14] sm:$0xf]
      %v409 = vld [vmem:[%s402 + $0x18] sm:$0xf]
      %v410 = vld [vmem:[%s402 + $0x1c] sm:$0xf]
      %v413 = vunpack.c.l.b16 %v400
      %v414 = vunpack.c.l.b16 %v401
      %v415 = vpack.c.b16 %v414, %v413
      %v417 = vshrl.u32 %v415, 16
      %v419 = vshll.u32 %v415, 16
      %v421 = vrot.slane %v419, 1
      %v422 = vor.u32 %v417, %v421
      %v431 = vunpack.c.l.b16 %v403
      %v432 = vunpack.c.l.b16 %v404
      %v433 = vunpack.c.l.b16 %v405
      %v434 = vunpack.c.l.b16 %v406
      %v435 = vunpack.c.l.b16 %v407
      %v436 = vunpack.c.l.b16 %v408
      %v437 = vunpack.c.l.b16 %v409
      %v438 = vunpack.c.l.b16 %v410
      %v439 = vpack.c.b16 %v432, %v431
      %v440 = vpack.c.b16 %v434, %v433
      %v441 = vpack.c.b16 %v436, %v435
      %v442 = vpack.c.b16 %v438, %v437
      %vm447 = vcmask 523264
      %v449 = vsel %vm447, %v422, 0
      %451 = vmatprep.subr.bf16.mxu0 0
      %452 = vmatpush1.bf16.msra.mxu0 0
      %453 = vmatprep.subr.bf16.mxu0 0
      %454 = vmatpush1.bf16.msra.mxu0 0
      %455 = vmatprep.subr.bf16.mxu0 0
      %456 = vmatpush1.bf16.msra.mxu0 0
      %457 = vmatprep.subr.bf16.mxu0 0
      %458 = vmatpush1.bf16.msra.mxu0 0
      %459 = vmatprep.subr.bf16.mxu0 0
      %460 = vmatpush1.bf16.msra.mxu0 %v442
      %461 = vmatprep.subr.bf16.mxu0 0
      %462 = vmatpush1.bf16.msra.mxu0 %v441
      %463 = vmatprep.subr.bf16.mxu0 0
      %464 = vmatpush1.bf16.msra.mxu0 %v440
      %465 = vmatprep.subr.bf16.mxu0 0
      %466 = vmatpush1.bf16.msra.mxu0 %v439
      %467 = vmatprep.subr.bf16.mxu0 0
      %468 = vmatpush2.bf16.msra.mxu0 0
      %469 = vmatprep.subr.bf16.mxu0 0
      %470 = vmatpush2.bf16.msra.mxu0 0
      %471 = vmatprep.subr.bf16.mxu0 0
      %472 = vmatpush2.bf16.msra.mxu0 0
      %473 = vmatprep.subr.bf16.mxu0 0
      %474 = vmatpush2.bf16.msra.mxu0 0
      %475 = vmatprep.subr.bf16.mxu0 0
      %476 = vmatpush2.bf16.msra.mxu0 0
      %477 = vmatprep.subr.bf16.mxu0 0
      %478 = vmatpush2.bf16.msra.mxu0 0
      %479 = vmatprep.subr.bf16.mxu0 0
      %480 = vmatpush2.bf16.msra.mxu0 0
      %481 = vmatprep.subr.bf16.mxu0 0
      %482 = vmatpush2.bf16.msra.mxu0 0
      %483 = vmatprep.mubr.bf16.mxu0 0
      %484 = vmatmul.mubr.bf16.gmra.mxu0 %v449
      %v485 = vpop.f32.mrf.mxu0
      %v486 = vadd.f32 0.0, %v485
      %v487 = vpop.f32.mrf.mxu0
      %v488 = vpop.f32.mrf.mxu0
      %v489 = vpop.f32.mrf.mxu0
      %490 = vdwg.mxu0
      %v492 = vlaneseq
      %v493 = vshrl.u32 %v492, 7
      %v494 = vsub.s32 0, %v493
      %v495 = vrot.slane %v399, %v494
      %v497 = vadd.f32 %v495, %v486
      %v498 = vld [vmem:[%s383] sm:$0xf]
      %s499 = scalar_lea.vmem %s3, 96
      %v500 = vld [vmem:[%s499] sm:$0xf]
      %v501 = vld [vmem:[%s499 + $0x4] sm:$0xf]
      %v502 = vld [vmem:[%s499 + $0x8] sm:$0xf]
      %v503 = vld [vmem:[%s499 + $0xc] sm:$0xf]
      %v504 = vld [vmem:[%s499 + $0x10] sm:$0xf]
      %v505 = vld [vmem:[%s499 + $0x14] sm:$0xf]
      %v506 = vld [vmem:[%s499 + $0x18] sm:$0xf]
      %v507 = vld [vmem:[%s499 + $0x1c] sm:$0xf]
      %v516 = vunpack.c.l.b16 %v500
      %v517 = vunpack.c.l.b16 %v501
      %v518 = vunpack.c.l.b16 %v502
      %v519 = vunpack.c.l.b16 %v503
      %v520 = vunpack.c.l.b16 %v504
      %v521 = vunpack.c.l.b16 %v505
      %v522 = vunpack.c.l.b16 %v506
      %v523 = vunpack.c.l.b16 %v507
      %v524 = vpack.c.b16 %v517, %v516
      %v525 = vpack.c.b16 %v519, %v518
      %v526 = vpack.c.b16 %v521, %v520
      %v527 = vpack.c.b16 %v523, %v522
      %v533 = vsel %vm447, %v498, 0
      %535 = vmatprep.subr.bf16.mxu0 0
      %536 = vmatpush1.bf16.msra.mxu0 0
      %537 = vmatprep.subr.bf16.mxu0 0
      %538 = vmatpush1.bf16.msra.mxu0 0
      %539 = vmatprep.subr.bf16.mxu0 0
      %540 = vmatpush1.bf16.msra.mxu0 0
      %541 = vmatprep.subr.bf16.mxu0 0
      %542 = vmatpush1.bf16.msra.mxu0 0
      %543 = vmatprep.subr.bf16.mxu0 0
      %544 = vmatpush1.bf16.msra.mxu0 %v527
      %545 = vmatprep.subr.bf16.mxu0 0
      %546 = vmatpush1.bf16.msra.mxu0 %v526
      %547 = vmatprep.subr.bf16.mxu0 0
      %548 = vmatpush1.bf16.msra.mxu0 %v525
      %549 = vmatprep.subr.bf16.mxu0 0
      %550 = vmatpush1.bf16.msra.mxu0 %v524
      %551 = vmatprep.subr.bf16.mxu0 0
      %552 = vmatpush2.bf16.msra.mxu0 0
      %553 = vmatprep.subr.bf16.mxu0 0
      %554 = vmatpush2.bf16.msra.mxu0 0
      %555 = vmatprep.subr.bf16.mxu0 0
      %556 = vmatpush2.bf16.msra.mxu0 0
      %557 = vmatprep.subr.bf16.mxu0 0
      %558 = vmatpush2.bf16.msra.mxu0 0
      %559 = vmatprep.subr.bf16.mxu0 0
      %560 = vmatpush2.bf16.msra.mxu0 0
      %561 = vmatprep.subr.bf16.mxu0 0
      %562 = vmatpush2.bf16.msra.mxu0 0
      %563 = vmatprep.subr.bf16.mxu0 0
      %564 = vmatpush2.bf16.msra.mxu0 0
      %565 = vmatprep.subr.bf16.mxu0 0
      %566 = vmatpush2.bf16.msra.mxu0 0
      %567 = vmatprep.mubr.bf16.mxu0 0
      %568 = vmatmul.mubr.bf16.gmra.mxu0 %v533
      %v569 = vpop.f32.mrf.mxu0
      %v570 = vadd.f32 0.0, %v569
      %v571 = vpop.f32.mrf.mxu0
      %v572 = vpop.f32.mrf.mxu0
      %v573 = vpop.f32.mrf.mxu0
      %574 = vdwg.mxu0
      %v575 = vadd.f32 %v497, %v570
      %v576 = vld [vmem:[%s383] sm:$0xe]
      %v577 = vld [vmem:[%s3] sm:$0xf]
      %v578 = vld [vmem:[%s3 + $0x4] sm:$0xf]
      %v579 = vld [vmem:[%s3 + $0x8] sm:$0xf]
      %v580 = vld [vmem:[%s3 + $0xc] sm:$0xf]
      %v581 = vld [vmem:[%s3 + $0x10] sm:$0xf]
      %v582 = vld [vmem:[%s3 + $0x14] sm:$0xf]
      %v583 = vld [vmem:[%s3 + $0x18] sm:$0xf]
      %v584 = vld [vmem:[%s3 + $0x1c] sm:$0xf]
      %v586 = vunpack.c.l.b16 %v576
      %v587 = vpack.c.b16 %v414, %v586
      %v588 = vrot.slane %v587, 1
      %v597 = vunpack.c.l.b16 %v577
      %v598 = vunpack.c.l.b16 %v578
      %v599 = vunpack.c.l.b16 %v579
      %v600 = vunpack.c.l.b16 %v580
      %v601 = vunpack.c.l.b16 %v581
      %v602 = vunpack.c.l.b16 %v582
      %v603 = vunpack.c.l.b16 %v583
      %v604 = vunpack.c.l.b16 %v584
      %v605 = vpack.c.b16 %v598, %v597
      %v606 = vpack.c.b16 %v600, %v599
      %v607 = vpack.c.b16 %v602, %v601
      %v608 = vpack.c.b16 %v604, %v603
      %v614 = vsel %vm447, %v588, 0
      %616 = vmatprep.subr.bf16.mxu0 0
      %617 = vmatpush1.bf16.msra.mxu0 0
      %618 = vmatprep.subr.bf16.mxu0 0
      %619 = vmatpush1.bf16.msra.mxu0 0
      %620 = vmatprep.subr.bf16.mxu0 0
      %621 = vmatpush1.bf16.msra.mxu0 0
      %622 = vmatprep.subr.bf16.mxu0 0
      %623 = vmatpush1.bf16.msra.mxu0 0
      %624 = vmatprep.subr.bf16.mxu0 0
      %625 = vmatpush1.bf16.msra.mxu0 %v608
      %626 = vmatprep.subr.bf16.mxu0 0
      %627 = vmatpush1.bf16.msra.mxu0 %v607
      %628 = vmatprep.subr.bf16.mxu0 0
      %629 = vmatpush1.bf16.msra.mxu0 %v606
      %630 = vmatprep.subr.bf16.mxu0 0
      %631 = vmatpush1.bf16.msra.mxu0 %v605
      %632 = vmatprep.subr.bf16.mxu0 0
      %633 = vmatpush2.bf16.msra.mxu0 0
      %634 = vmatprep.subr.bf16.mxu0 0
      %635 = vmatpush2.bf16.msra.mxu0 0
      %636 = vmatprep.subr.bf16.mxu0 0
      %637 = vmatpush2.bf16.msra.mxu0 0
      %638 = vmatprep.subr.bf16.mxu0 0
      %639 = vmatpush2.bf16.msra.mxu0 0
      %640 = vmatprep.subr.bf16.mxu0 0
      %641 = vmatpush2.bf16.msra.mxu0 0
      %642 = vmatprep.subr.bf16.mxu0 0
      %643 = vmatpush2.bf16.msra.mxu0 0
      %644 = vmatprep.subr.bf16.mxu0 0
      %645 = vmatpush2.bf16.msra.mxu0 0
      %646 = vmatprep.subr.bf16.mxu0 0
      %647 = vmatpush2.bf16.msra.mxu0 0
      %648 = vmatprep.mubr.bf16.mxu0 0
      %649 = vmatmul.mubr.bf16.gmra.mxu0 %v614
      %v650 = vpop.f32.mrf.mxu0
      %v651 = vadd.f32 0.0, %v650
      %v652 = vpop.f32.mrf.mxu0
      %v653 = vpop.f32.mrf.mxu0
      %v654 = vpop.f32.mrf.mxu0
      %655 = vdwg.mxu0
      %v656 = vadd.f32 %v495, %v651
      %s657 = scalar_lea.vmem %s3, 64
      %v658 = vld [vmem:[%s657] sm:$0xf]
      %v659 = vld [vmem:[%s657 + $0x4] sm:$0xf]
      %v660 = vld [vmem:[%s657 + $0x8] sm:$0xf]
      %v661 = vld [vmem:[%s657 + $0xc] sm:$0xf]
      %v662 = vld [vmem:[%s657 + $0x10] sm:$0xf]
      %v663 = vld [vmem:[%s657 + $0x14] sm:$0xf]
      %v664 = vld [vmem:[%s657 + $0x18] sm:$0xf]
      %v665 = vld [vmem:[%s657 + $0x1c] sm:$0xf]
      %v674 = vunpack.c.l.b16 %v658
      %v675 = vunpack.c.l.b16 %v659
      %v676 = vunpack.c.l.b16 %v660
      %v677 = vunpack.c.l.b16 %v661
      %v678 = vunpack.c.l.b16 %v662
      %v679 = vunpack.c.l.b16 %v663
      %v680 = vunpack.c.l.b16 %v664
      %v681 = vunpack.c.l.b16 %v665
      %v682 = vpack.c.b16 %v675, %v674
      %v683 = vpack.c.b16 %v677, %v676
      %v684 = vpack.c.b16 %v679, %v678
      %v685 = vpack.c.b16 %v681, %v680
      %690 = vmatprep.subr.bf16.mxu0 0
      %691 = vmatpush1.bf16.msra.mxu0 0
      %692 = vmatprep.subr.bf16.mxu0 0
      %693 = vmatpush1.bf16.msra.mxu0 0
      %694 = vmatprep.subr.bf16.mxu0 0
      %695 = vmatpush1.bf16.msra.mxu0 0
      %696 = vmatprep.subr.bf16.mxu0 0
      %697 = vmatpush1.bf16.msra.mxu0 0
      %698 = vmatprep.subr.bf16.mxu0 0
      %699 = vmatpush1.bf16.msra.mxu0 %v685
      %700 = vmatprep.subr.bf16.mxu0 0
      %701 = vmatpush1.bf16.msra.mxu0 %v684
      %702 = vmatprep.subr.bf16.mxu0 0
      %703 = vmatpush1.bf16.msra.mxu0 %v683
      %704 = vmatprep.subr.bf16.mxu0 0
      %705 = vmatpush1.bf16.msra.mxu0 %v682
      %706 = vmatprep.subr.bf16.mxu0 0
      %707 = vmatpush2.bf16.msra.mxu0 0
      %708 = vmatprep.subr.bf16.mxu0 0
      %709 = vmatpush2.bf16.msra.mxu0 0
      %710 = vmatprep.subr.bf16.mxu0 0
      %711 = vmatpush2.bf16.msra.mxu0 0
      %712 = vmatprep.subr.bf16.mxu0 0
      %713 = vmatpush2.bf16.msra.mxu0 0
      %714 = vmatprep.subr.bf16.mxu0 0
      %715 = vmatpush2.bf16.msra.mxu0 0
      %716 = vmatprep.subr.bf16.mxu0 0
      %717 = vmatpush2.bf16.msra.mxu0 0
      %718 = vmatprep.subr.bf16.mxu0 0
      %719 = vmatpush2.bf16.msra.mxu0 0
      %720 = vmatprep.subr.bf16.mxu0 0
      %721 = vmatpush2.bf16.msra.mxu0 0
      %722 = vmatprep.mubr.bf16.mxu0 0
      %723 = vmatmul.mubr.bf16.gmra.mxu0 %v449
      %v724 = vpop.f32.mrf.mxu0
      %v725 = vadd.f32 0.0, %v724
      %v726 = vpop.f32.mrf.mxu0
      %v727 = vpop.f32.mrf.mxu0
      %v728 = vpop.f32.mrf.mxu0
      %729 = vdwg.mxu0
      %v730 = vadd.f32 %v656, %v725
      %v731 = vpack.c.bf16 %v575, %v575
      %vm732 = vcmask 519168
      %733 = vst.msk [vmem:[#allocation2] sm:$0xf] %vm732, %v731
      %vm734 = vcmask 516096
      %vm735 = vsmask.f32 256
      %vm736 = vmand %vm734, %vm735
      %v737 = vld [vmem:[#allocation2 + $0x4] sm:$0x1]
      %v738 = vsel %vm736, 0, %v737
      %739 = vst [vmem:[#allocation2 + $0x4] sm:$0x1] %v738
      %v740 = vld [vmem:[#allocation3] sm:$0x1]
      %v741 = vsel %vm736, 0, %v740
      %742 = vst [vmem:[#allocation3] sm:$0x1] %v741
      %v743 = vpack.c.bf16 %v730, %v730
      %v745 = vunpack.c.l.b16 %v743
      %v746 = vpack.c.b16 %v745, %v745
      %v748 = vshrl.u32 %v746, 16
      %v750 = vrot.slane %v748, 7
      %v751 = vshll.u32 %v746, 16
      %v753 = vor.u32 %v750, %v751
      %v754 = vrot.slane %v750, 4
      %vm757 = vcmask 519168
      %vm758 = vsmask.f32 7938
      %vm759 = vmand %vm757, %vm758
      %v760 = vld [vmem:[#allocation3] sm:$0xf]
      %v761 = vsel %vm759, %v753, %v760
      %762 = vst [vmem:[#allocation3] sm:$0xf] %v761
      %v763 = vld [vmem:[#allocation3 + $0x4] sm:$0x1]
      %v764 = vsel %vm736, %v754, %v763
      %765 = vst [vmem:[#allocation3 + $0x4] sm:$0x1] %v764
      %v766 = vld [vmem:[%s8] sm:$0x1]
      %v767 = vld [vmem:[#allocation2] sm:$0xf]
      %v768 = vld [vmem:[#allocation2 + $0x4] sm:$0x1]
      %v769 = vld [vmem:[#allocation3] sm:$0xf]
      %v770 = vld [vmem:[#allocation3 + $0x4] sm:$0x1]
      %v771 = vld [vmem:[%s388] sm:$0xf]
      %v772 = vld [vmem:[%s388 + $0x4] sm:$0x1]
      %v773 = vld [vmem:[%s393] sm:$0xf]
      %v774 = vld [vmem:[%s393 + $0x4] sm:$0x1]
      %v775 = vld [vmem:[%s4] sm:$0xf]
      %v776 = vld [vmem:[%s4 + $0x4] sm:$0xf]
      %v777 = vld [vmem:[%s4 + $0x8] sm:$0xf]
      %v778 = vld [vmem:[%s4 + $0xc] sm:$0xf]
      %v779 = vld [vmem:[%s4 + $0x10] sm:$0xf]
      %v780 = vld [vmem:[%s4 + $0x14] sm:$0xf]
      %v781 = vld [vmem:[%s4 + $0x18] sm:$0xf]
      %v782 = vld [vmem:[%s4 + $0x1c] sm:$0xf]
      %v791 = vunpack.c.l.b16 %v775
      %v792 = vunpack.c.l.b16 %v776
      %v793 = vunpack.c.l.b16 %v777
      %v794 = vunpack.c.l.b16 %v778
      %v795 = vunpack.c.l.b16 %v779
      %v796 = vunpack.c.l.b16 %v780
      %v797 = vunpack.c.l.b16 %v781
      %v798 = vunpack.c.l.b16 %v782
      %v799 = vpack.c.b16 %v792, %v791
      %v800 = vpack.c.b16 %v794, %v793
      %v801 = vpack.c.b16 %v796, %v795
      %v802 = vpack.c.b16 %v798, %v797
      %v808 = vsel %vm447, %v769, 0
      %810 = vmatprep.subr.bf16.mxu0 0
      %811 = vmatpush1.bf16.msra.mxu0 0
      %812 = vmatprep.subr.bf16.mxu0 0
      %813 = vmatpush1.bf16.msra.mxu0 0
      %814 = vmatprep.subr.bf16.mxu0 0
      %815 = vmatpush1.bf16.msra.mxu0 0
      %816 = vmatprep.subr.bf16.mxu0 0
      %817 = vmatpush1.bf16.msra.mxu0 0
      %818 = vmatprep.subr.bf16.mxu0 0
      %819 = vmatpush1.bf16.msra.mxu0 %v802
      %820 = vmatprep.subr.bf16.mxu0 0
      %821 = vmatpush1.bf16.msra.mxu0 %v801
      %822 = vmatprep.subr.bf16.mxu0 0
      %823 = vmatpush1.bf16.msra.mxu0 %v800
      %824 = vmatprep.subr.bf16.mxu0 0
      %825 = vmatpush1.bf16.msra.mxu0 %v799
      %826 = vmatprep.subr.bf16.mxu0 0
      %827 = vmatpush2.bf16.msra.mxu0 0
      %828 = vmatprep.subr.bf16.mxu0 0
      %829 = vmatpush2.bf16.msra.mxu0 0
      %830 = vmatprep.subr.bf16.mxu0 0
      %831 = vmatpush2.bf16.msra.mxu0 0
      %832 = vmatprep.subr.bf16.mxu0 0
      %833 = vmatpush2.bf16.msra.mxu0 0
      %834 = vmatprep.subr.bf16.mxu0 0
      %835 = vmatpush2.bf16.msra.mxu0 0
      %836 = vmatprep.subr.bf16.mxu0 0
      %837 = vmatpush2.bf16.msra.mxu0 0
      %838 = vmatprep.subr.bf16.mxu0 0
      %839 = vmatpush2.bf16.msra.mxu0 0
      %840 = vmatprep.subr.bf16.mxu0 0
      %841 = vmatpush2.bf16.msra.mxu0 0
      %842 = vmatprep.mubr.bf16.mxu0 0
      %843 = vmatmul.mubr.bf16.gmra.mxu0 %v808
      %v844 = vpop.f32.mrf.mxu0
      %v845 = vadd.f32 0.0, %v844
      %v846 = vpop.f32.mrf.mxu0
      %v847 = vpop.f32.mrf.mxu0
      %v848 = vpop.f32.mrf.mxu0
      %849 = vdwg.mxu0
      %v851 = vlaneseq
      %v852 = vshrl.u32 %v851, 7
      %v853 = vsub.s32 0, %v852
      %v854 = vrot.slane %v766, %v853
      %v856 = vadd.f32 %v854, %v845
      %s857 = scalar_lea.vmem %s4, 32
      %v858 = vld [vmem:[%s857] sm:$0xf]
      %v859 = vld [vmem:[%s857 + $0x4] sm:$0xf]
      %v860 = vld [vmem:[%s857 + $0x8] sm:$0xf]
      %v861 = vld [vmem:[%s857 + $0xc] sm:$0xf]
      %v862 = vld [vmem:[%s857 + $0x10] sm:$0xf]
      %v863 = vld [vmem:[%s857 + $0x14] sm:$0xf]
      %v864 = vld [vmem:[%s857 + $0x18] sm:$0xf]
      %v865 = vld [vmem:[%s857 + $0x1c] sm:$0xf]
      %v874 = vunpack.c.l.b16 %v858
      %v875 = vunpack.c.l.b16 %v859
      %v876 = vunpack.c.l.b16 %v860
      %v877 = vunpack.c.l.b16 %v861
      %v878 = vunpack.c.l.b16 %v862
      %v879 = vunpack.c.l.b16 %v863
      %v880 = vunpack.c.l.b16 %v864
      %v881 = vunpack.c.l.b16 %v865
      %v882 = vpack.c.b16 %v875, %v874
      %v883 = vpack.c.b16 %v877, %v876
      %v884 = vpack.c.b16 %v879, %v878
      %v885 = vpack.c.b16 %v881, %v880
      %v891 = vsel %vm447, %v767, 0
      %893 = vmatprep.subr.bf16.mxu0 0
      %894 = vmatpush1.bf16.msra.mxu0 0
      %895 = vmatprep.subr.bf16.mxu0 0
      %896 = vmatpush1.bf16.msra.mxu0 0
      %897 = vmatprep.subr.bf16.mxu0 0
      %898 = vmatpush1.bf16.msra.mxu0 0
      %899 = vmatprep.subr.bf16.mxu0 0
      %900 = vmatpush1.bf16.msra.mxu0 0
      %901 = vmatprep.subr.bf16.mxu0 0
      %902 = vmatpush1.bf16.msra.mxu0 %v885
      %903 = vmatprep.subr.bf16.mxu0 0
      %904 = vmatpush1.bf16.msra.mxu0 %v884
      %905 = vmatprep.subr.bf16.mxu0 0
      %906 = vmatpush1.bf16.msra.mxu0 %v883
      %907 = vmatprep.subr.bf16.mxu0 0
      %908 = vmatpush1.bf16.msra.mxu0 %v882
      %909 = vmatprep.subr.bf16.mxu0 0
      %910 = vmatpush2.bf16.msra.mxu0 0
      %911 = vmatprep.subr.bf16.mxu0 0
      %912 = vmatpush2.bf16.msra.mxu0 0
      %913 = vmatprep.subr.bf16.mxu0 0
      %914 = vmatpush2.bf16.msra.mxu0 0
      %915 = vmatprep.subr.bf16.mxu0 0
      %916 = vmatpush2.bf16.msra.mxu0 0
      %917 = vmatprep.subr.bf16.mxu0 0
      %918 = vmatpush2.bf16.msra.mxu0 0
      %919 = vmatprep.subr.bf16.mxu0 0
      %920 = vmatpush2.bf16.msra.mxu0 0
      %921 = vmatprep.subr.bf16.mxu0 0
      %922 = vmatpush2.bf16.msra.mxu0 0
      %923 = vmatprep.subr.bf16.mxu0 0
      %924 = vmatpush2.bf16.msra.mxu0 0
      %925 = vmatprep.mubr.bf16.mxu0 0
      %926 = vmatmul.mubr.bf16.gmra.mxu0 %v891
      %v927 = vpop.f32.mrf.mxu0
      %v928 = vadd.f32 0.0, %v927
      %v929 = vpop.f32.mrf.mxu0
      %v930 = vpop.f32.mrf.mxu0
      %v931 = vpop.f32.mrf.mxu0
      %932 = vdwg.mxu0
      %v933 = vadd.f32 %v856, %v928
      %s934 = scalar_lea.vmem %s4, 64
      %v935 = vld [vmem:[%s934] sm:$0xf]
      %v936 = vld [vmem:[%s934 + $0x4] sm:$0xf]
      %v937 = vld [vmem:[%s934 + $0x8] sm:$0xf]
      %v938 = vld [vmem:[%s934 + $0xc] sm:$0xf]
      %v939 = vld [vmem:[%s934 + $0x10] sm:$0xf]
      %v940 = vld [vmem:[%s934 + $0x14] sm:$0xf]
      %v941 = vld [vmem:[%s934 + $0x18] sm:$0xf]
      %v942 = vld [vmem:[%s934 + $0x1c] sm:$0xf]
      %v945 = vunpack.c.l.b16 %v769
      %v946 = vunpack.c.l.b16 %v770
      %v947 = vpack.c.b16 %v946, %v945
      %v949 = vshrl.u32 %v947, 16
      %v951 = vshll.u32 %v947, 16
      %v953 = vrot.slane %v951, 1
      %v954 = vor.u32 %v949, %v953
      %v963 = vunpack.c.l.b16 %v935
      %v964 = vunpack.c.l.b16 %v936
      %v965 = vunpack.c.l.b16 %v937
      %v966 = vunpack.c.l.b16 %v938
      %v967 = vunpack.c.l.b16 %v939
      %v968 = vunpack.c.l.b16 %v940
      %v969 = vunpack.c.l.b16 %v941
      %v970 = vunpack.c.l.b16 %v942
      %v971 = vpack.c.b16 %v964, %v963
      %v972 = vpack.c.b16 %v966, %v965
      %v973 = vpack.c.b16 %v968, %v967
      %v974 = vpack.c.b16 %v970, %v969
      %v980 = vsel %vm447, %v954, 0
      %982 = vmatprep.subr.bf16.mxu0 0
      %983 = vmatpush1.bf16.msra.mxu0 0
      %984 = vmatprep.subr.bf16.mxu0 0
      %985 = vmatpush1.bf16.msra.mxu0 0
      %986 = vmatprep.subr.bf16.mxu0 0
      %987 = vmatpush1.bf16.msra.mxu0 0
      %988 = vmatprep.subr.bf16.mxu0 0
      %989 = vmatpush1.bf16.msra.mxu0 0
      %990 = vmatprep.subr.bf16.mxu0 0
      %991 = vmatpush1.bf16.msra.mxu0 %v974
      %992 = vmatprep.subr.bf16.mxu0 0
      %993 = vmatpush1.bf16.msra.mxu0 %v973
      %994 = vmatprep.subr.bf16.mxu0 0
      %995 = vmatpush1.bf16.msra.mxu0 %v972
      %996 = vmatprep.subr.bf16.mxu0 0
      %997 = vmatpush1.bf16.msra.mxu0 %v971
      %998 = vmatprep.subr.bf16.mxu0 0
      %999 = vmatpush2.bf16.msra.mxu0 0
      %1000 = vmatprep.subr.bf16.mxu0 0
      %1001 = vmatpush2.bf16.msra.mxu0 0
      %1002 = vmatprep.subr.bf16.mxu0 0
      %1003 = vmatpush2.bf16.msra.mxu0 0
      %1004 = vmatprep.subr.bf16.mxu0 0
      %1005 = vmatpush2.bf16.msra.mxu0 0
      %1006 = vmatprep.subr.bf16.mxu0 0
      %1007 = vmatpush2.bf16.msra.mxu0 0
      %1008 = vmatprep.subr.bf16.mxu0 0
      %1009 = vmatpush2.bf16.msra.mxu0 0
      %1010 = vmatprep.subr.bf16.mxu0 0
      %1011 = vmatpush2.bf16.msra.mxu0 0
      %1012 = vmatprep.subr.bf16.mxu0 0
      %1013 = vmatpush2.bf16.msra.mxu0 0
      %1014 = vmatprep.mubr.bf16.mxu0 0
      %1015 = vmatmul.mubr.bf16.gmra.mxu0 %v980
      %v1016 = vpop.f32.mrf.mxu0
      %v1017 = vadd.f32 0.0, %v1016
      %v1018 = vpop.f32.mrf.mxu0
      %v1019 = vpop.f32.mrf.mxu0
      %v1020 = vpop.f32.mrf.mxu0
      %1021 = vdwg.mxu0
      %v1022 = vadd.f32 %v933, %v1017
      %v1023 = vld [vmem:[%s5] sm:$0xf]
      %v1024 = vld [vmem:[%s5 + $0x4] sm:$0xf]
      %v1025 = vld [vmem:[%s5 + $0x8] sm:$0xf]
      %v1026 = vld [vmem:[%s5 + $0xc] sm:$0xf]
      %v1027 = vld [vmem:[%s5 + $0x10] sm:$0xf]
      %v1028 = vld [vmem:[%s5 + $0x14] sm:$0xf]
      %v1029 = vld [vmem:[%s5 + $0x18] sm:$0xf]
      %v1030 = vld [vmem:[%s5 + $0x1c] sm:$0xf]
      %v1039 = vunpack.c.l.b16 %v1023
      %v1040 = vunpack.c.l.b16 %v1024
      %v1041 = vunpack.c.l.b16 %v1025
      %v1042 = vunpack.c.l.b16 %v1026
      %v1043 = vunpack.c.l.b16 %v1027
      %v1044 = vunpack.c.l.b16 %v1028
      %v1045 = vunpack.c.l.b16 %v1029
      %v1046 = vunpack.c.l.b16 %v1030
      %v1047 = vpack.c.b16 %v1040, %v1039
      %v1048 = vpack.c.b16 %v1042, %v1041
      %v1049 = vpack.c.b16 %v1044, %v1043
      %v1050 = vpack.c.b16 %v1046, %v1045
      %v1056 = vsel %vm447, %v773, 0
      %1058 = vmatprep.subr.bf16.mxu0 0
      %1059 = vmatpush1.bf16.msra.mxu0 0
      %1060 = vmatprep.subr.bf16.mxu0 0
      %1061 = vmatpush1.bf16.msra.mxu0 0
      %1062 = vmatprep.subr.bf16.mxu0 0
      %1063 = vmatpush1.bf16.msra.mxu0 0
      %1064 = vmatprep.subr.bf16.mxu0 0
      %1065 = vmatpush1.bf16.msra.mxu0 0
      %1066 = vmatprep.subr.bf16.mxu0 0
      %1067 = vmatpush1.bf16.msra.mxu0 %v1050
      %1068 = vmatprep.subr.bf16.mxu0 0
      %1069 = vmatpush1.bf16.msra.mxu0 %v1049
      %1070 = vmatprep.subr.bf16.mxu0 0
      %1071 = vmatpush1.bf16.msra.mxu0 %v1048
      %1072 = vmatprep.subr.bf16.mxu0 0
      %1073 = vmatpush1.bf16.msra.mxu0 %v1047
      %1074 = vmatprep.subr.bf16.mxu0 0
      %1075 = vmatpush2.bf16.msra.mxu0 0
      %1076 = vmatprep.subr.bf16.mxu0 0
      %1077 = vmatpush2.bf16.msra.mxu0 0
      %1078 = vmatprep.subr.bf16.mxu0 0
      %1079 = vmatpush2.bf16.msra.mxu0 0
      %1080 = vmatprep.subr.bf16.mxu0 0
      %1081 = vmatpush2.bf16.msra.mxu0 0
      %1082 = vmatprep.subr.bf16.mxu0 0
      %1083 = vmatpush2.bf16.msra.mxu0 0
      %1084 = vmatprep.subr.bf16.mxu0 0
      %1085 = vmatpush2.bf16.msra.mxu0 0
      %1086 = vmatprep.subr.bf16.mxu0 0
      %1087 = vmatpush2.bf16.msra.mxu0 0
      %1088 = vmatprep.subr.bf16.mxu0 0
      %1089 = vmatpush2.bf16.msra.mxu0 0
      %1090 = vmatprep.mubr.bf16.mxu0 0
      %1091 = vmatmul.mubr.bf16.gmra.mxu0 %v1056
      %v1092 = vpop.f32.mrf.mxu0
      %v1093 = vadd.f32 0.0, %v1092
      %v1094 = vpop.f32.mrf.mxu0
      %v1095 = vpop.f32.mrf.mxu0
      %v1096 = vpop.f32.mrf.mxu0
      %1097 = vdwg.mxu0
      %v1098 = vadd.f32 %v1022, %v1093
      %s1099 = scalar_lea.vmem %s5, 32
      %v1100 = vld [vmem:[%s1099] sm:$0xf]
      %v1101 = vld [vmem:[%s1099 + $0x4] sm:$0xf]
      %v1102 = vld [vmem:[%s1099 + $0x8] sm:$0xf]
      %v1103 = vld [vmem:[%s1099 + $0xc] sm:$0xf]
      %v1104 = vld [vmem:[%s1099 + $0x10] sm:$0xf]
      %v1105 = vld [vmem:[%s1099 + $0x14] sm:$0xf]
      %v1106 = vld [vmem:[%s1099 + $0x18] sm:$0xf]
      %v1107 = vld [vmem:[%s1099 + $0x1c] sm:$0xf]
      %v1116 = vunpack.c.l.b16 %v1100
      %v1117 = vunpack.c.l.b16 %v1101
      %v1118 = vunpack.c.l.b16 %v1102
      %v1119 = vunpack.c.l.b16 %v1103
      %v1120 = vunpack.c.l.b16 %v1104
      %v1121 = vunpack.c.l.b16 %v1105
      %v1122 = vunpack.c.l.b16 %v1106
      %v1123 = vunpack.c.l.b16 %v1107
      %v1124 = vpack.c.b16 %v1117, %v1116
      %v1125 = vpack.c.b16 %v1119, %v1118
      %v1126 = vpack.c.b16 %v1121, %v1120
      %v1127 = vpack.c.b16 %v1123, %v1122
      %v1133 = vsel %vm447, %v771, 0
      %1135 = vmatprep.subr.bf16.mxu0 0
      %1136 = vmatpush1.bf16.msra.mxu0 0
      %1137 = vmatprep.subr.bf16.mxu0 0
      %1138 = vmatpush1.bf16.msra.mxu0 0
      %1139 = vmatprep.subr.bf16.mxu0 0
      %1140 = vmatpush1.bf16.msra.mxu0 0
      %1141 = vmatprep.subr.bf16.mxu0 0
      %1142 = vmatpush1.bf16.msra.mxu0 0
      %1143 = vmatprep.subr.bf16.mxu0 0
      %1144 = vmatpush1.bf16.msra.mxu0 %v1127
      %1145 = vmatprep.subr.bf16.mxu0 0
      %1146 = vmatpush1.bf16.msra.mxu0 %v1126
      %1147 = vmatprep.subr.bf16.mxu0 0
      %1148 = vmatpush1.bf16.msra.mxu0 %v1125
      %1149 = vmatprep.subr.bf16.mxu0 0
      %1150 = vmatpush1.bf16.msra.mxu0 %v1124
      %1151 = vmatprep.subr.bf16.mxu0 0
      %1152 = vmatpush2.bf16.msra.mxu0 0
      %1153 = vmatprep.subr.bf16.mxu0 0
      %1154 = vmatpush2.bf16.msra.mxu0 0
      %1155 = vmatprep.subr.bf16.mxu0 0
      %1156 = vmatpush2.bf16.msra.mxu0 0
      %1157 = vmatprep.subr.bf16.mxu0 0
      %1158 = vmatpush2.bf16.msra.mxu0 0
      %1159 = vmatprep.subr.bf16.mxu0 0
      %1160 = vmatpush2.bf16.msra.mxu0 0
      %1161 = vmatprep.subr.bf16.mxu0 0
      %1162 = vmatpush2.bf16.msra.mxu0 0
      %1163 = vmatprep.subr.bf16.mxu0 0
      %1164 = vmatpush2.bf16.msra.mxu0 0
      %1165 = vmatprep.subr.bf16.mxu0 0
      %1166 = vmatpush2.bf16.msra.mxu0 0
      %1167 = vmatprep.mubr.bf16.mxu0 0
      %1168 = vmatmul.mubr.bf16.gmra.mxu0 %v1133
      %v1169 = vpop.f32.mrf.mxu0
      %v1170 = vadd.f32 0.0, %v1169
      %v1171 = vpop.f32.mrf.mxu0
      %v1172 = vpop.f32.mrf.mxu0
      %v1173 = vpop.f32.mrf.mxu0
      %1174 = vdwg.mxu0
      %v1175 = vadd.f32 %v1098, %v1170
      %s1176 = scalar_lea.vmem %s5, 64
      %v1177 = vld [vmem:[%s1176] sm:$0xf]
      %v1178 = vld [vmem:[%s1176 + $0x4] sm:$0xf]
      %v1179 = vld [vmem:[%s1176 + $0x8] sm:$0xf]
      %v1180 = vld [vmem:[%s1176 + $0xc] sm:$0xf]
      %v1181 = vld [vmem:[%s1176 + $0x10] sm:$0xf]
      %v1182 = vld [vmem:[%s1176 + $0x14] sm:$0xf]
      %v1183 = vld [vmem:[%s1176 + $0x18] sm:$0xf]
      %v1184 = vld [vmem:[%s1176 + $0x1c] sm:$0xf]
      %v1187 = vunpack.c.l.b16 %v773
      %v1188 = vunpack.c.l.b16 %v774
      %v1189 = vpack.c.b16 %v1188, %v1187
      %v1191 = vshrl.u32 %v1189, 16
      %v1193 = vshll.u32 %v1189, 16
      %v1195 = vrot.slane %v1193, 1
      %v1196 = vor.u32 %v1191, %v1195
      %v1205 = vunpack.c.l.b16 %v1177
      %v1206 = vunpack.c.l.b16 %v1178
      %v1207 = vunpack.c.l.b16 %v1179
      %v1208 = vunpack.c.l.b16 %v1180
      %v1209 = vunpack.c.l.b16 %v1181
      %v1210 = vunpack.c.l.b16 %v1182
      %v1211 = vunpack.c.l.b16 %v1183
      %v1212 = vunpack.c.l.b16 %v1184
      %v1213 = vpack.c.b16 %v1206, %v1205
      %v1214 = vpack.c.b16 %v1208, %v1207
      %v1215 = vpack.c.b16 %v1210, %v1209
      %v1216 = vpack.c.b16 %v1212, %v1211
      %v1222 = vsel %vm447, %v1196, 0
      %1224 = vmatprep.subr.bf16.mxu0 0
      %1225 = vmatpush1.bf16.msra.mxu0 0
      %1226 = vmatprep.subr.bf16.mxu0 0
      %1227 = vmatpush1.bf16.msra.mxu0 0
      %1228 = vmatprep.subr.bf16.mxu0 0
      %1229 = vmatpush1.bf16.msra.mxu0 0
      %1230 = vmatprep.subr.bf16.mxu0 0
      %1231 = vmatpush1.bf16.msra.mxu0 0
      %1232 = vmatprep.subr.bf16.mxu0 0
      %1233 = vmatpush1.bf16.msra.mxu0 %v1216
      %1234 = vmatprep.subr.bf16.mxu0 0
      %1235 = vmatpush1.bf16.msra.mxu0 %v1215
      %1236 = vmatprep.subr.bf16.mxu0 0
      %1237 = vmatpush1.bf16.msra.mxu0 %v1214
      %1238 = vmatprep.subr.bf16.mxu0 0
      %1239 = vmatpush1.bf16.msra.mxu0 %v1213
      %1240 = vmatprep.subr.bf16.mxu0 0
      %1241 = vmatpush2.bf16.msra.mxu0 0
      %1242 = vmatprep.subr.bf16.mxu0 0
      %1243 = vmatpush2.bf16.msra.mxu0 0
      %1244 = vmatprep.subr.bf16.mxu0 0
      %1245 = vmatpush2.bf16.msra.mxu0 0
      %1246 = vmatprep.subr.bf16.mxu0 0
      %1247 = vmatpush2.bf16.msra.mxu0 0
      %1248 = vmatprep.subr.bf16.mxu0 0
      %1249 = vmatpush2.bf16.msra.mxu0 0
      %1250 = vmatprep.subr.bf16.mxu0 0
      %1251 = vmatpush2.bf16.msra.mxu0 0
      %1252 = vmatprep.subr.bf16.mxu0 0
      %1253 = vmatpush2.bf16.msra.mxu0 0
      %1254 = vmatprep.subr.bf16.mxu0 0
      %1255 = vmatpush2.bf16.msra.mxu0 0
      %1256 = vmatprep.mubr.bf16.mxu0 0
      %1257 = vmatmul.mubr.bf16.gmra.mxu0 %v1222
      %v1258 = vpop.f32.mrf.mxu0
      %v1259 = vadd.f32 0.0, %v1258
      %v1260 = vpop.f32.mrf.mxu0
      %v1261 = vpop.f32.mrf.mxu0
      %v1262 = vpop.f32.mrf.mxu0
      %1263 = vdwg.mxu0
      %v1264 = vadd.f32 %v1175, %v1259
      %1265 = vmatprep.subr.bf16.mxu0 0
      %1266 = vmatpush1.bf16.msra.mxu0 0
      %1267 = vmatprep.subr.bf16.mxu0 0
      %1268 = vmatpush1.bf16.msra.mxu0 0
      %1269 = vmatprep.subr.bf16.mxu0 0
      %1270 = vmatpush1.bf16.msra.mxu0 0
      %1271 = vmatprep.subr.bf16.mxu0 0
      %1272 = vmatpush1.bf16.msra.mxu0 0
      %1273 = vmatprep.subr.bf16.mxu0 0
      %1274 = vmatpush1.bf16.msra.mxu0 %v802
      %1275 = vmatprep.subr.bf16.mxu0 0
      %1276 = vmatpush1.bf16.msra.mxu0 %v801
      %1277 = vmatprep.subr.bf16.mxu0 0
      %1278 = vmatpush1.bf16.msra.mxu0 %v800
      %1279 = vmatprep.subr.bf16.mxu0 0
      %1280 = vmatpush1.bf16.msra.mxu0 %v799
      %1281 = vmatprep.subr.bf16.mxu0 0
      %1282 = vmatpush2.bf16.msra.mxu0 0
      %1283 = vmatprep.subr.bf16.mxu0 0
      %1284 = vmatpush2.bf16.msra.mxu0 0
      %1285 = vmatprep.subr.bf16.mxu0 0
      %1286 = vmatpush2.bf16.msra.mxu0 0
      %1287 = vmatprep.subr.bf16.mxu0 0
      %1288 = vmatpush2.bf16.msra.mxu0 0
      %1289 = vmatprep.subr.bf16.mxu0 0
      %1290 = vmatpush2.bf16.msra.mxu0 0
      %1291 = vmatprep.subr.bf16.mxu0 0
      %1292 = vmatpush2.bf16.msra.mxu0 0
      %1293 = vmatprep.subr.bf16.mxu0 0
      %1294 = vmatpush2.bf16.msra.mxu0 0
      %1295 = vmatprep.subr.bf16.mxu0 0
      %1296 = vmatpush2.bf16.msra.mxu0 0
      %1297 = vmatprep.mubr.bf16.mxu0 0
      %1298 = vmatmul.mubr.bf16.gmra.mxu0 %v891
      %v1299 = vpop.f32.mrf.mxu0
      %v1300 = vadd.f32 0.0, %v1299
      %v1301 = vpop.f32.mrf.mxu0
      %v1302 = vpop.f32.mrf.mxu0
      %v1303 = vpop.f32.mrf.mxu0
      %1304 = vdwg.mxu0
      %v1305 = vadd.f32 %v854, %v1300
      %1306 = vmatprep.subr.bf16.mxu0 0
      %1307 = vmatpush1.bf16.msra.mxu0 0
      %1308 = vmatprep.subr.bf16.mxu0 0
      %1309 = vmatpush1.bf16.msra.mxu0 0
      %1310 = vmatprep.subr.bf16.mxu0 0
      %1311 = vmatpush1.bf16.msra.mxu0 0
      %1312 = vmatprep.subr.bf16.mxu0 0
      %1313 = vmatpush1.bf16.msra.mxu0 0
      %1314 = vmatprep.subr.bf16.mxu0 0
      %1315 = vmatpush1.bf16.msra.mxu0 %v885
      %1316 = vmatprep.subr.bf16.mxu0 0
      %1317 = vmatpush1.bf16.msra.mxu0 %v884
      %1318 = vmatprep.subr.bf16.mxu0 0
      %1319 = vmatpush1.bf16.msra.mxu0 %v883
      %1320 = vmatprep.subr.bf16.mxu0 0
      %1321 = vmatpush1.bf16.msra.mxu0 %v882
      %1322 = vmatprep.subr.bf16.mxu0 0
      %1323 = vmatpush2.bf16.msra.mxu0 0
      %1324 = vmatprep.subr.bf16.mxu0 0
      %1325 = vmatpush2.bf16.msra.mxu0 0
      %1326 = vmatprep.subr.bf16.mxu0 0
      %1327 = vmatpush2.bf16.msra.mxu0 0
      %1328 = vmatprep.subr.bf16.mxu0 0
      %1329 = vmatpush2.bf16.msra.mxu0 0
      %1330 = vmatprep.subr.bf16.mxu0 0
      %1331 = vmatpush2.bf16.msra.mxu0 0
      %1332 = vmatprep.subr.bf16.mxu0 0
      %1333 = vmatpush2.bf16.msra.mxu0 0
      %1334 = vmatprep.subr.bf16.mxu0 0
      %1335 = vmatpush2.bf16.msra.mxu0 0
      %1336 = vmatprep.subr.bf16.mxu0 0
      %1337 = vmatpush2.bf16.msra.mxu0 0
      %1338 = vmatprep.mubr.bf16.mxu0 0
      %1339 = vmatmul.mubr.bf16.gmra.mxu0 %v980
      %v1340 = vpop.f32.mrf.mxu0
      %v1341 = vadd.f32 0.0, %v1340
      %v1342 = vpop.f32.mrf.mxu0
      %v1343 = vpop.f32.mrf.mxu0
      %v1344 = vpop.f32.mrf.mxu0
      %1345 = vdwg.mxu0
      %v1346 = vadd.f32 %v1305, %v1341
      %v1349 = vunpack.c.l.b16 %v767
      %v1350 = vunpack.c.l.b16 %v768
      %v1351 = vpack.c.b16 %v1350, %v1349
      %v1353 = vshrl.u32 %v1351, 16
      %v1355 = vshll.u32 %v1351, 16
      %v1357 = vrot.slane %v1355, 1
      %v1358 = vor.u32 %v1353, %v1357
      %v1360 = vsel %vm447, %v1358, 0
      %1362 = vmatprep.subr.bf16.mxu0 0
      %1363 = vmatpush1.bf16.msra.mxu0 0
      %1364 = vmatprep.subr.bf16.mxu0 0
      %1365 = vmatpush1.bf16.msra.mxu0 0
      %1366 = vmatprep.subr.bf16.mxu0 0
      %1367 = vmatpush1.bf16.msra.mxu0 0
      %1368 = vmatprep.subr.bf16.mxu0 0
      %1369 = vmatpush1.bf16.msra.mxu0 0
      %1370 = vmatprep.subr.bf16.mxu0 0
      %1371 = vmatpush1.bf16.msra.mxu0 %v974
      %1372 = vmatprep.subr.bf16.mxu0 0
      %1373 = vmatpush1.bf16.msra.mxu0 %v973
      %1374 = vmatprep.subr.bf16.mxu0 0
      %1375 = vmatpush1.bf16.msra.mxu0 %v972
      %1376 = vmatprep.subr.bf16.mxu0 0
      %1377 = vmatpush1.bf16.msra.mxu0 %v971
      %1378 = vmatprep.subr.bf16.mxu0 0
      %1379 = vmatpush2.bf16.msra.mxu0 0
      %1380 = vmatprep.subr.bf16.mxu0 0
      %1381 = vmatpush2.bf16.msra.mxu0 0
      %1382 = vmatprep.subr.bf16.mxu0 0
      %1383 = vmatpush2.bf16.msra.mxu0 0
      %1384 = vmatprep.subr.bf16.mxu0 0
      %1385 = vmatpush2.bf16.msra.mxu0 0
      %1386 = vmatprep.subr.bf16.mxu0 0
      %1387 = vmatpush2.bf16.msra.mxu0 0
      %1388 = vmatprep.subr.bf16.mxu0 0
      %1389 = vmatpush2.bf16.msra.mxu0 0
      %1390 = vmatprep.subr.bf16.mxu0 0
      %1391 = vmatpush2.bf16.msra.mxu0 0
      %1392 = vmatprep.subr.bf16.mxu0 0
      %1393 = vmatpush2.bf16.msra.mxu0 0
      %1394 = vmatprep.mubr.bf16.mxu0 0
      %1395 = vmatmul.mubr.bf16.gmra.mxu0 %v1360
      %v1396 = vpop.f32.mrf.mxu0
      %v1397 = vadd.f32 0.0, %v1396
      %v1398 = vpop.f32.mrf.mxu0
      %v1399 = vpop.f32.mrf.mxu0
      %v1400 = vpop.f32.mrf.mxu0
      %1401 = vdwg.mxu0
      %v1402 = vadd.f32 %v1346, %v1397
      %1403 = vmatprep.subr.bf16.mxu0 0
      %1404 = vmatpush1.bf16.msra.mxu0 0
      %1405 = vmatprep.subr.bf16.mxu0 0
      %1406 = vmatpush1.bf16.msra.mxu0 0
      %1407 = vmatprep.subr.bf16.mxu0 0
      %1408 = vmatpush1.bf16.msra.mxu0 0
      %1409 = vmatprep.subr.bf16.mxu0 0
      %1410 = vmatpush1.bf16.msra.mxu0 0
      %1411 = vmatprep.subr.bf16.mxu0 0
      %1412 = vmatpush1.bf16.msra.mxu0 %v1050
      %1413 = vmatprep.subr.bf16.mxu0 0
      %1414 = vmatpush1.bf16.msra.mxu0 %v1049
      %1415 = vmatprep.subr.bf16.mxu0 0
      %1416 = vmatpush1.bf16.msra.mxu0 %v1048
      %1417 = vmatprep.subr.bf16.mxu0 0
      %1418 = vmatpush1.bf16.msra.mxu0 %v1047
      %1419 = vmatprep.subr.bf16.mxu0 0
      %1420 = vmatpush2.bf16.msra.mxu0 0
      %1421 = vmatprep.subr.bf16.mxu0 0
      %1422 = vmatpush2.bf16.msra.mxu0 0
      %1423 = vmatprep.subr.bf16.mxu0 0
      %1424 = vmatpush2.bf16.msra.mxu0 0
      %1425 = vmatprep.subr.bf16.mxu0 0
      %1426 = vmatpush2.bf16.msra.mxu0 0
      %1427 = vmatprep.subr.bf16.mxu0 0
      %1428 = vmatpush2.bf16.msra.mxu0 0
      %1429 = vmatprep.subr.bf16.mxu0 0
      %1430 = vmatpush2.bf16.msra.mxu0 0
      %1431 = vmatprep.subr.bf16.mxu0 0
      %1432 = vmatpush2.bf16.msra.mxu0 0
      %1433 = vmatprep.subr.bf16.mxu0 0
      %1434 = vmatpush2.bf16.msra.mxu0 0
      %1435 = vmatprep.mubr.bf16.mxu0 0
      %1436 = vmatmul.mubr.bf16.gmra.mxu0 %v1133
      %v1437 = vpop.f32.mrf.mxu0
      %v1438 = vadd.f32 0.0, %v1437
      %v1439 = vpop.f32.mrf.mxu0
      %v1440 = vpop.f32.mrf.mxu0
      %v1441 = vpop.f32.mrf.mxu0
      %1442 = vdwg.mxu0
      %v1443 = vadd.f32 %v1402, %v1438
      %1444 = vmatprep.subr.bf16.mxu0 0
      %1445 = vmatpush1.bf16.msra.mxu0 0
      %1446 = vmatprep.subr.bf16.mxu0 0
      %1447 = vmatpush1.bf16.msra.mxu0 0
      %1448 = vmatprep.subr.bf16.mxu0 0
      %1449 = vmatpush1.bf16.msra.mxu0 0
      %1450 = vmatprep.subr.bf16.mxu0 0
      %1451 = vmatpush1.bf16.msra.mxu0 0
      %1452 = vmatprep.subr.bf16.mxu0 0
      %1453 = vmatpush1.bf16.msra.mxu0 %v1127
      %1454 = vmatprep.subr.bf16.mxu0 0
      %1455 = vmatpush1.bf16.msra.mxu0 %v1126
      %1456 = vmatprep.subr.bf16.mxu0 0
      %1457 = vmatpush1.bf16.msra.mxu0 %v1125
      %1458 = vmatprep.subr.bf16.mxu0 0
      %1459 = vmatpush1.bf16.msra.mxu0 %v1124
      %1460 = vmatprep.subr.bf16.mxu0 0
      %1461 = vmatpush2.bf16.msra.mxu0 0
      %1462 = vmatprep.subr.bf16.mxu0 0
      %1463 = vmatpush2.bf16.msra.mxu0 0
      %1464 = vmatprep.subr.bf16.mxu0 0
      %1465 = vmatpush2.bf16.msra.mxu0 0
      %1466 = vmatprep.subr.bf16.mxu0 0
      %1467 = vmatpush2.bf16.msra.mxu0 0
      %1468 = vmatprep.subr.bf16.mxu0 0
      %1469 = vmatpush2.bf16.msra.mxu0 0
      %1470 = vmatprep.subr.bf16.mxu0 0
      %1471 = vmatpush2.bf16.msra.mxu0 0
      %1472 = vmatprep.subr.bf16.mxu0 0
      %1473 = vmatpush2.bf16.msra.mxu0 0
      %1474 = vmatprep.subr.bf16.mxu0 0
      %1475 = vmatpush2.bf16.msra.mxu0 0
      %1476 = vmatprep.mubr.bf16.mxu0 0
      %1477 = vmatmul.mubr.bf16.gmra.mxu0 %v1222
      %v1478 = vpop.f32.mrf.mxu0
      %v1479 = vadd.f32 0.0, %v1478
      %v1480 = vpop.f32.mrf.mxu0
      %v1481 = vpop.f32.mrf.mxu0
      %v1482 = vpop.f32.mrf.mxu0
      %1483 = vdwg.mxu0
      %v1484 = vadd.f32 %v1443, %v1479
      %v1487 = vunpack.c.l.b16 %v771
      %v1488 = vunpack.c.l.b16 %v772
      %v1489 = vpack.c.b16 %v1488, %v1487
      %v1491 = vshrl.u32 %v1489, 16
      %v1493 = vshll.u32 %v1489, 16
      %v1495 = vrot.slane %v1493, 1
      %v1496 = vor.u32 %v1491, %v1495
      %v1498 = vsel %vm447, %v1496, 0
      %1500 = vmatprep.subr.bf16.mxu0 0
      %1501 = vmatpush1.bf16.msra.mxu0 0
      %1502 = vmatprep.subr.bf16.mxu0 0
      %1503 = vmatpush1.bf16.msra.mxu0 0
      %1504 = vmatprep.subr.bf16.mxu0 0
      %1505 = vmatpush1.bf16.msra.mxu0 0
      %1506 = vmatprep.subr.bf16.mxu0 0
      %1507 = vmatpush1.bf16.msra.mxu0 0
      %1508 = vmatprep.subr.bf16.mxu0 0
      %1509 = vmatpush1.bf16.msra.mxu0 %v1216
      %1510 = vmatprep.subr.bf16.mxu0 0
      %1511 = vmatpush1.bf16.msra.mxu0 %v1215
      %1512 = vmatprep.subr.bf16.mxu0 0
      %1513 = vmatpush1.bf16.msra.mxu0 %v1214
      %1514 = vmatprep.subr.bf16.mxu0 0
      %1515 = vmatpush1.bf16.msra.mxu0 %v1213
      %1516 = vmatprep.subr.bf16.mxu0 0
      %1517 = vmatpush2.bf16.msra.mxu0 0
      %1518 = vmatprep.subr.bf16.mxu0 0
      %1519 = vmatpush2.bf16.msra.mxu0 0
      %1520 = vmatprep.subr.bf16.mxu0 0
      %1521 = vmatpush2.bf16.msra.mxu0 0
      %1522 = vmatprep.subr.bf16.mxu0 0
      %1523 = vmatpush2.bf16.msra.mxu0 0
      %1524 = vmatprep.subr.bf16.mxu0 0
      %1525 = vmatpush2.bf16.msra.mxu0 0
      %1526 = vmatprep.subr.bf16.mxu0 0
      %1527 = vmatpush2.bf16.msra.mxu0 0
      %1528 = vmatprep.subr.bf16.mxu0 0
      %1529 = vmatpush2.bf16.msra.mxu0 0
      %1530 = vmatprep.subr.bf16.mxu0 0
      %1531 = vmatpush2.bf16.msra.mxu0 0
      %1532 = vmatprep.mubr.bf16.mxu0 0
      %1533 = vmatmul.mubr.bf16.gmra.mxu0 %v1498
      %v1534 = vpop.f32.mrf.mxu0
      %v1535 = vadd.f32 0.0, %v1534
      %v1536 = vpop.f32.mrf.mxu0
      %v1537 = vpop.f32.mrf.mxu0
      %v1538 = vpop.f32.mrf.mxu0
      %1539 = vdwg.mxu0
      %v1540 = vadd.f32 %v1484, %v1535
      %v1541 = vmax.f32 %v1264, 0.0
      %v1542 = vpack.c.bf16 %v1541, %v1541
      %1543 = vst.msk [vmem:[#allocation4] sm:$0xf] %vm732, %v1542
      %v1544 = vld [vmem:[#allocation4 + $0x4] sm:$0x1]
      %v1545 = vsel %vm736, 0, %v1544
      %1546 = vst [vmem:[#allocation4 + $0x4] sm:$0x1] %v1545
      %v1547 = vld [vmem:[#allocation5] sm:$0x1]
      %v1548 = vsel %vm736, 0, %v1547
      %1549 = vst [vmem:[#allocation5] sm:$0x1] %v1548
      %v1550 = vmax.f32 %v1540, 0.0
      %v1551 = vpack.c.bf16 %v1550, %v1550
      %v1553 = vunpack.c.l.b16 %v1551
      %v1554 = vpack.c.b16 %v1553, %v1553
      %v1556 = vshrl.u32 %v1554, 16
      %v1558 = vrot.slane %v1556, 7
      %v1559 = vshll.u32 %v1554, 16
      %v1561 = vor.u32 %v1558, %v1559
      %v1562 = vrot.slane %v1558, 4
      %v1565 = vld [vmem:[#allocation5] sm:$0xf]
      %v1566 = vsel %vm759, %v1561, %v1565
      %1567 = vst [vmem:[#allocation5] sm:$0xf] %v1566
      %v1568 = vld [vmem:[#allocation5 + $0x4] sm:$0x1]
      %v1569 = vsel %vm736, %v1562, %v1568
      %1570 = vst [vmem:[#allocation5 + $0x4] sm:$0x1] %v1569
      %v1571 = vld [vmem:[%s9] sm:$0x1]
      %v1572 = vld [vmem:[#allocation4] sm:$0xf]
      %v1573 = vld [vmem:[#allocation4 + $0x4] sm:$0x1]
      %v1574 = vld [vmem:[#allocation5] sm:$0xf]
      %v1575 = vld [vmem:[#allocation5 + $0x4] sm:$0x1]
      %v1576 = vld [vmem:[%s6] sm:$0xf]
      %v1577 = vld [vmem:[%s6 + $0x4] sm:$0xf]
      %v1578 = vld [vmem:[%s6 + $0x8] sm:$0xf]
      %v1579 = vld [vmem:[%s6 + $0xc] sm:$0xf]
      %v1580 = vld [vmem:[%s6 + $0x10] sm:$0xf]
      %v1581 = vld [vmem:[%s6 + $0x14] sm:$0xf]
      %v1582 = vld [vmem:[%s6 + $0x18] sm:$0xf]
      %v1583 = vld [vmem:[%s6 + $0x1c] sm:$0xf]
      %v1592 = vunpack.c.l.b16 %v1576
      %v1593 = vunpack.c.l.b16 %v1577
      %v1594 = vunpack.c.l.b16 %v1578
      %v1595 = vunpack.c.l.b16 %v1579
      %v1596 = vunpack.c.l.b16 %v1580
      %v1597 = vunpack.c.l.b16 %v1581
      %v1598 = vunpack.c.l.b16 %v1582
      %v1599 = vunpack.c.l.b16 %v1583
      %v1600 = vpack.c.b16 %v1593, %v1592
      %v1601 = vpack.c.b16 %v1595, %v1594
      %v1602 = vpack.c.b16 %v1597, %v1596
      %v1603 = vpack.c.b16 %v1599, %v1598
      %v1609 = vsel %vm447, %v1574, 0
      %1611 = vmatprep.subr.bf16.mxu0 0
      %1612 = vmatpush1.bf16.msra.mxu0 0
      %1613 = vmatprep.subr.bf16.mxu0 0
      %1614 = vmatpush1.bf16.msra.mxu0 0
      %1615 = vmatprep.subr.bf16.mxu0 0
      %1616 = vmatpush1.bf16.msra.mxu0 0
      %1617 = vmatprep.subr.bf16.mxu0 0
      %1618 = vmatpush1.bf16.msra.mxu0 0
      %1619 = vmatprep.subr.bf16.mxu0 0
      %1620 = vmatpush1.bf16.msra.mxu0 %v1603
      %1621 = vmatprep.subr.bf16.mxu0 0
      %1622 = vmatpush1.bf16.msra.mxu0 %v1602
      %1623 = vmatprep.subr.bf16.mxu0 0
      %1624 = vmatpush1.bf16.msra.mxu0 %v1601
      %1625 = vmatprep.subr.bf16.mxu0 0
      %1626 = vmatpush1.bf16.msra.mxu0 %v1600
      %1627 = vmatprep.subr.bf16.mxu0 0
      %1628 = vmatpush2.bf16.msra.mxu0 0
      %1629 = vmatprep.subr.bf16.mxu0 0
      %1630 = vmatpush2.bf16.msra.mxu0 0
      %1631 = vmatprep.subr.bf16.mxu0 0
      %1632 = vmatpush2.bf16.msra.mxu0 0
      %1633 = vmatprep.subr.bf16.mxu0 0
      %1634 = vmatpush2.bf16.msra.mxu0 0
      %1635 = vmatprep.subr.bf16.mxu0 0
      %1636 = vmatpush2.bf16.msra.mxu0 0
      %1637 = vmatprep.subr.bf16.mxu0 0
      %1638 = vmatpush2.bf16.msra.mxu0 0
      %1639 = vmatprep.subr.bf16.mxu0 0
      %1640 = vmatpush2.bf16.msra.mxu0 0
      %1641 = vmatprep.subr.bf16.mxu0 0
      %1642 = vmatpush2.bf16.msra.mxu0 0
      %1643 = vmatprep.mubr.bf16.mxu0 0
      %1644 = vmatmul.mubr.bf16.gmra.mxu0 %v1609
      %v1645 = vpop.f32.mrf.mxu0
      %v1646 = vadd.f32 0.0, %v1645
      %v1647 = vpop.f32.mrf.mxu0
      %v1648 = vpop.f32.mrf.mxu0
      %v1649 = vpop.f32.mrf.mxu0
      %1650 = vdwg.mxu0
      %v1652 = vlaneseq
      %v1653 = vshrl.u32 %v1652, 7
      %v1654 = vsub.s32 0, %v1653
      %v1655 = vrot.slane %v1571, %v1654
      %v1657 = vadd.f32 %v1655, %v1646
      %s1658 = scalar_lea.vmem %s6, 32
      %v1659 = vld [vmem:[%s1658] sm:$0xf]
      %v1660 = vld [vmem:[%s1658 + $0x4] sm:$0xf]
      %v1661 = vld [vmem:[%s1658 + $0x8] sm:$0xf]
      %v1662 = vld [vmem:[%s1658 + $0xc] sm:$0xf]
      %v1663 = vld [vmem:[%s1658 + $0x10] sm:$0xf]
      %v1664 = vld [vmem:[%s1658 + $0x14] sm:$0xf]
      %v1665 = vld [vmem:[%s1658 + $0x18] sm:$0xf]
      %v1666 = vld [vmem:[%s1658 + $0x1c] sm:$0xf]
      %v1675 = vunpack.c.l.b16 %v1659
      %v1676 = vunpack.c.l.b16 %v1660
      %v1677 = vunpack.c.l.b16 %v1661
      %v1678 = vunpack.c.l.b16 %v1662
      %v1679 = vunpack.c.l.b16 %v1663
      %v1680 = vunpack.c.l.b16 %v1664
      %v1681 = vunpack.c.l.b16 %v1665
      %v1682 = vunpack.c.l.b16 %v1666
      %v1683 = vpack.c.b16 %v1676, %v1675
      %v1684 = vpack.c.b16 %v1678, %v1677
      %v1685 = vpack.c.b16 %v1680, %v1679
      %v1686 = vpack.c.b16 %v1682, %v1681
      %v1692 = vsel %vm447, %v1572, 0
      %1694 = vmatprep.subr.bf16.mxu0 0
      %1695 = vmatpush1.bf16.msra.mxu0 0
      %1696 = vmatprep.subr.bf16.mxu0 0
      %1697 = vmatpush1.bf16.msra.mxu0 0
      %1698 = vmatprep.subr.bf16.mxu0 0
      %1699 = vmatpush1.bf16.msra.mxu0 0
      %1700 = vmatprep.subr.bf16.mxu0 0
      %1701 = vmatpush1.bf16.msra.mxu0 0
      %1702 = vmatprep.subr.bf16.mxu0 0
      %1703 = vmatpush1.bf16.msra.mxu0 %v1686
      %1704 = vmatprep.subr.bf16.mxu0 0
      %1705 = vmatpush1.bf16.msra.mxu0 %v1685
      %1706 = vmatprep.subr.bf16.mxu0 0
      %1707 = vmatpush1.bf16.msra.mxu0 %v1684
      %1708 = vmatprep.subr.bf16.mxu0 0
      %1709 = vmatpush1.bf16.msra.mxu0 %v1683
      %1710 = vmatprep.subr.bf16.mxu0 0
      %1711 = vmatpush2.bf16.msra.mxu0 0
      %1712 = vmatprep.subr.bf16.mxu0 0
      %1713 = vmatpush2.bf16.msra.mxu0 0
      %1714 = vmatprep.subr.bf16.mxu0 0
      %1715 = vmatpush2.bf16.msra.mxu0 0
      %1716 = vmatprep.subr.bf16.mxu0 0
      %1717 = vmatpush2.bf16.msra.mxu0 0
      %1718 = vmatprep.subr.bf16.mxu0 0
      %1719 = vmatpush2.bf16.msra.mxu0 0
      %1720 = vmatprep.subr.bf16.mxu0 0
      %1721 = vmatpush2.bf16.msra.mxu0 0
      %1722 = vmatprep.subr.bf16.mxu0 0
      %1723 = vmatpush2.bf16.msra.mxu0 0
      %1724 = vmatprep.subr.bf16.mxu0 0
      %1725 = vmatpush2.bf16.msra.mxu0 0
      %1726 = vmatprep.mubr.bf16.mxu0 0
      %1727 = vmatmul.mubr.bf16.gmra.mxu0 %v1692
      %v1728 = vpop.f32.mrf.mxu0
      %v1729 = vadd.f32 0.0, %v1728
      %v1730 = vpop.f32.mrf.mxu0
      %v1731 = vpop.f32.mrf.mxu0
      %v1732 = vpop.f32.mrf.mxu0
      %1733 = vdwg.mxu0
      %v1734 = vadd.f32 %v1657, %v1729
      %s1735 = scalar_lea.vmem %s6, 64
      %v1736 = vld [vmem:[%s1735] sm:$0xf]
      %v1737 = vld [vmem:[%s1735 + $0x4] sm:$0xf]
      %v1738 = vld [vmem:[%s1735 + $0x8] sm:$0xf]
      %v1739 = vld [vmem:[%s1735 + $0xc] sm:$0xf]
      %v1740 = vld [vmem:[%s1735 + $0x10] sm:$0xf]
      %v1741 = vld [vmem:[%s1735 + $0x14] sm:$0xf]
      %v1742 = vld [vmem:[%s1735 + $0x18] sm:$0xf]
      %v1743 = vld [vmem:[%s1735 + $0x1c] sm:$0xf]
      %v1746 = vunpack.c.l.b16 %v1574
      %v1747 = vunpack.c.l.b16 %v1575
      %v1748 = vpack.c.b16 %v1747, %v1746
      %v1750 = vshrl.u32 %v1748, 16
      %v1752 = vshll.u32 %v1748, 16
      %v1754 = vrot.slane %v1752, 1
      %v1755 = vor.u32 %v1750, %v1754
      %v1764 = vunpack.c.l.b16 %v1736
      %v1765 = vunpack.c.l.b16 %v1737
      %v1766 = vunpack.c.l.b16 %v1738
      %v1767 = vunpack.c.l.b16 %v1739
      %v1768 = vunpack.c.l.b16 %v1740
      %v1769 = vunpack.c.l.b16 %v1741
      %v1770 = vunpack.c.l.b16 %v1742
      %v1771 = vunpack.c.l.b16 %v1743
      %v1772 = vpack.c.b16 %v1765, %v1764
      %v1773 = vpack.c.b16 %v1767, %v1766
      %v1774 = vpack.c.b16 %v1769, %v1768
      %v1775 = vpack.c.b16 %v1771, %v1770
      %v1781 = vsel %vm447, %v1755, 0
      %1783 = vmatprep.subr.bf16.mxu0 0
      %1784 = vmatpush1.bf16.msra.mxu0 0
      %1785 = vmatprep.subr.bf16.mxu0 0
      %1786 = vmatpush1.bf16.msra.mxu0 0
      %1787 = vmatprep.subr.bf16.mxu0 0
      %1788 = vmatpush1.bf16.msra.mxu0 0
      %1789 = vmatprep.subr.bf16.mxu0 0
      %1790 = vmatpush1.bf16.msra.mxu0 0
      %1791 = vmatprep.subr.bf16.mxu0 0
      %1792 = vmatpush1.bf16.msra.mxu0 %v1775
      %1793 = vmatprep.subr.bf16.mxu0 0
      %1794 = vmatpush1.bf16.msra.mxu0 %v1774
      %1795 = vmatprep.subr.bf16.mxu0 0
      %1796 = vmatpush1.bf16.msra.mxu0 %v1773
      %1797 = vmatprep.subr.bf16.mxu0 0
      %1798 = vmatpush1.bf16.msra.mxu0 %v1772
      %1799 = vmatprep.subr.bf16.mxu0 0
      %1800 = vmatpush2.bf16.msra.mxu0 0
      %1801 = vmatprep.subr.bf16.mxu0 0
      %1802 = vmatpush2.bf16.msra.mxu0 0
      %1803 = vmatprep.subr.bf16.mxu0 0
      %1804 = vmatpush2.bf16.msra.mxu0 0
      %1805 = vmatprep.subr.bf16.mxu0 0
      %1806 = vmatpush2.bf16.msra.mxu0 0
      %1807 = vmatprep.subr.bf16.mxu0 0
      %1808 = vmatpush2.bf16.msra.mxu0 0
      %1809 = vmatprep.subr.bf16.mxu0 0
      %1810 = vmatpush2.bf16.msra.mxu0 0
      %1811 = vmatprep.subr.bf16.mxu0 0
      %1812 = vmatpush2.bf16.msra.mxu0 0
      %1813 = vmatprep.subr.bf16.mxu0 0
      %1814 = vmatpush2.bf16.msra.mxu0 0
      %1815 = vmatprep.mubr.bf16.mxu0 0
      %1816 = vmatmul.mubr.bf16.gmra.mxu0 %v1781
      %v1817 = vpop.f32.mrf.mxu0
      %v1818 = vadd.f32 0.0, %v1817
      %v1819 = vpop.f32.mrf.mxu0
      %v1820 = vpop.f32.mrf.mxu0
      %v1821 = vpop.f32.mrf.mxu0
      %1822 = vdwg.mxu0
      %v1823 = vadd.f32 %v1734, %v1818
      %1824 = vmatprep.subr.bf16.mxu0 0
      %1825 = vmatpush1.bf16.msra.mxu0 0
      %1826 = vmatprep.subr.bf16.mxu0 0
      %1827 = vmatpush1.bf16.msra.mxu0 0
      %1828 = vmatprep.subr.bf16.mxu0 0
      %1829 = vmatpush1.bf16.msra.mxu0 0
      %1830 = vmatprep.subr.bf16.mxu0 0
      %1831 = vmatpush1.bf16.msra.mxu0 0
      %1832 = vmatprep.subr.bf16.mxu0 0
      %1833 = vmatpush1.bf16.msra.mxu0 %v1603
      %1834 = vmatprep.subr.bf16.mxu0 0
      %1835 = vmatpush1.bf16.msra.mxu0 %v1602
      %1836 = vmatprep.subr.bf16.mxu0 0
      %1837 = vmatpush1.bf16.msra.mxu0 %v1601
      %1838 = vmatprep.subr.bf16.mxu0 0
      %1839 = vmatpush1.bf16.msra.mxu0 %v1600
      %1840 = vmatprep.subr.bf16.mxu0 0
      %1841 = vmatpush2.bf16.msra.mxu0 0
      %1842 = vmatprep.subr.bf16.mxu0 0
      %1843 = vmatpush2.bf16.msra.mxu0 0
      %1844 = vmatprep.subr.bf16.mxu0 0
      %1845 = vmatpush2.bf16.msra.mxu0 0
      %1846 = vmatprep.subr.bf16.mxu0 0
      %1847 = vmatpush2.bf16.msra.mxu0 0
      %1848 = vmatprep.subr.bf16.mxu0 0
      %1849 = vmatpush2.bf16.msra.mxu0 0
      %1850 = vmatprep.subr.bf16.mxu0 0
      %1851 = vmatpush2.bf16.msra.mxu0 0
      %1852 = vmatprep.subr.bf16.mxu0 0
      %1853 = vmatpush2.bf16.msra.mxu0 0
      %1854 = vmatprep.subr.bf16.mxu0 0
      %1855 = vmatpush2.bf16.msra.mxu0 0
      %1856 = vmatprep.mubr.bf16.mxu0 0
      %1857 = vmatmul.mubr.bf16.gmra.mxu0 %v1692
      %v1858 = vpop.f32.mrf.mxu0
      %v1859 = vadd.f32 0.0, %v1858
      %v1860 = vpop.f32.mrf.mxu0
      %v1861 = vpop.f32.mrf.mxu0
      %v1862 = vpop.f32.mrf.mxu0
      %1863 = vdwg.mxu0
      %v1864 = vadd.f32 %v1655, %v1859
      %1865 = vmatprep.subr.bf16.mxu0 0
      %1866 = vmatpush1.bf16.msra.mxu0 0
      %1867 = vmatprep.subr.bf16.mxu0 0
      %1868 = vmatpush1.bf16.msra.mxu0 0
      %1869 = vmatprep.subr.bf16.mxu0 0
      %1870 = vmatpush1.bf16.msra.mxu0 0
      %1871 = vmatprep.subr.bf16.mxu0 0
      %1872 = vmatpush1.bf16.msra.mxu0 0
      %1873 = vmatprep.subr.bf16.mxu0 0
      %1874 = vmatpush1.bf16.msra.mxu0 %v1686
      %1875 = vmatprep.subr.bf16.mxu0 0
      %1876 = vmatpush1.bf16.msra.mxu0 %v1685
      %1877 = vmatprep.subr.bf16.mxu0 0
      %1878 = vmatpush1.bf16.msra.mxu0 %v1684
      %1879 = vmatprep.subr.bf16.mxu0 0
      %1880 = vmatpush1.bf16.msra.mxu0 %v1683
      %1881 = vmatprep.subr.bf16.mxu0 0
      %1882 = vmatpush2.bf16.msra.mxu0 0
      %1883 = vmatprep.subr.bf16.mxu0 0
      %1884 = vmatpush2.bf16.msra.mxu0 0
      %1885 = vmatprep.subr.bf16.mxu0 0
      %1886 = vmatpush2.bf16.msra.mxu0 0
      %1887 = vmatprep.subr.bf16.mxu0 0
      %1888 = vmatpush2.bf16.msra.mxu0 0
      %1889 = vmatprep.subr.bf16.mxu0 0
      %1890 = vmatpush2.bf16.msra.mxu0 0
      %1891 = vmatprep.subr.bf16.mxu0 0
      %1892 = vmatpush2.bf16.msra.mxu0 0
      %1893 = vmatprep.subr.bf16.mxu0 0
      %1894 = vmatpush2.bf16.msra.mxu0 0
      %1895 = vmatprep.subr.bf16.mxu0 0
      %1896 = vmatpush2.bf16.msra.mxu0 0
      %1897 = vmatprep.mubr.bf16.mxu0 0
      %1898 = vmatmul.mubr.bf16.gmra.mxu0 %v1781
      %v1899 = vpop.f32.mrf.mxu0
      %v1900 = vadd.f32 0.0, %v1899
      %v1901 = vpop.f32.mrf.mxu0
      %v1902 = vpop.f32.mrf.mxu0
      %v1903 = vpop.f32.mrf.mxu0
      %1904 = vdwg.mxu0
      %v1905 = vadd.f32 %v1864, %v1900
      %v1908 = vunpack.c.l.b16 %v1572
      %v1909 = vunpack.c.l.b16 %v1573
      %v1910 = vpack.c.b16 %v1909, %v1908
      %v1912 = vshrl.u32 %v1910, 16
      %v1914 = vshll.u32 %v1910, 16
      %v1916 = vrot.slane %v1914, 1
      %v1917 = vor.u32 %v1912, %v1916
      %v1919 = vsel %vm447, %v1917, 0
      %1921 = vmatprep.subr.bf16.mxu0 0
      %1922 = vmatpush1.bf16.msra.mxu0 0
      %1923 = vmatprep.subr.bf16.mxu0 0
      %1924 = vmatpush1.bf16.msra.mxu0 0
      %1925 = vmatprep.subr.bf16.mxu0 0
      %1926 = vmatpush1.bf16.msra.mxu0 0
      %1927 = vmatprep.subr.bf16.mxu0 0
      %1928 = vmatpush1.bf16.msra.mxu0 0
      %1929 = vmatprep.subr.bf16.mxu0 0
      %1930 = vmatpush1.bf16.msra.mxu0 %v1775
      %1931 = vmatprep.subr.bf16.mxu0 0
      %1932 = vmatpush1.bf16.msra.mxu0 %v1774
      %1933 = vmatprep.subr.bf16.mxu0 0
      %1934 = vmatpush1.bf16.msra.mxu0 %v1773
      %1935 = vmatprep.subr.bf16.mxu0 0
      %1936 = vmatpush1.bf16.msra.mxu0 %v1772
      %1937 = vmatprep.subr.bf16.mxu0 0
      %1938 = vmatpush2.bf16.msra.mxu0 0
      %1939 = vmatprep.subr.bf16.mxu0 0
      %1940 = vmatpush2.bf16.msra.mxu0 0
      %1941 = vmatprep.subr.bf16.mxu0 0
      %1942 = vmatpush2.bf16.msra.mxu0 0
      %1943 = vmatprep.subr.bf16.mxu0 0
      %1944 = vmatpush2.bf16.msra.mxu0 0
      %1945 = vmatprep.subr.bf16.mxu0 0
      %1946 = vmatpush2.bf16.msra.mxu0 0
      %1947 = vmatprep.subr.bf16.mxu0 0
      %1948 = vmatpush2.bf16.msra.mxu0 0
      %1949 = vmatprep.subr.bf16.mxu0 0
      %1950 = vmatpush2.bf16.msra.mxu0 0
      %1951 = vmatprep.subr.bf16.mxu0 0
      %1952 = vmatpush2.bf16.msra.mxu0 0
      %1953 = vmatprep.mubr.bf16.mxu0 0
      %1954 = vmatmul.mubr.bf16.gmra.mxu0 %v1919
      %v1955 = vpop.f32.mrf.mxu0
      %v1956 = vadd.f32 0.0, %v1955
      %v1957 = vpop.f32.mrf.mxu0
      %v1958 = vpop.f32.mrf.mxu0
      %v1959 = vpop.f32.mrf.mxu0
      %1960 = vdwg.mxu0
      %v1961 = vadd.f32 %v1905, %v1956
      %v1962 = vmax.f32 %v1823, 0.0
      %v1963 = vmax.f32 %v1961, 0.0
      %1965 = vrot.lane.b32.xlu0 %v1963, 64
      %v1966 = vpop.permute.xlu0 %1965
      %v1968 = vsel %vm447, %v1962, %v1966
      %1969 = vst [vmem:[%s397] sm:$0xff] %v1968
      %p1970 = scmp.lt.s32.totalorder %s21, 1
      %s1971 = scalar_select %p1970, %s21, 1
      %s1972 = smul.addr %s1971, 8
      %s1973 = scalar_lea.vmem %s10, %s1972
      // Predicated region
      $region61: #{unet_up_origin_forward.1} parent=59 // pred_check
        %p1974 = pneg %p264
      $region62: #{unet_up_origin_forward.1} parent=59 // pred_check_branch
        %1976 = sbr.rel (%p1974) target = $region64
      $region63: #{unet_up_origin_forward.1} parent=59 // pred_region
        _
      $region64: #{unet_up_origin_forward.1} parent=59 // pred_fallthru
        _
    $region60: #{unet_up_origin_forward.1} parent=5 // pred_fallthru
      _
    %p1977 = scmp.le.s32.totalorder 2, %s16
    // Predicated region
    $region65: #{unet_up_origin_forward.1} parent=5 // pred_check
      %p1978 = pneg %p1977
    $region66: #{unet_up_origin_forward.1} parent=5 // pred_check_branch
      %1980 = sbr.rel (%p1978) target = $region68
    $region67: #{unet_up_origin_forward.1} parent=5 // pred_region
      %s1981 = ssub.s32 %s16, 2
      // Predicated region
      $region69: #{unet_up_origin_forward.1} parent=67 // pred_check
        %p1982 = pneg %p270
      $region70: #{unet_up_origin_forward.1} parent=67 // pred_check_branch
        %1984 = sbr.rel (%p1982) target = $region72
      $region71: #{unet_up_origin_forward.1} parent=67 // pred_region
        %p1985 = scmp.lt.s32.totalorder %s22, 1
        %s1986 = scalar_select %p1985, %s22, 1
        %s1987 = smul.addr %s1986, 8
        %s1988 = scalar_lea.vmem %s10, %s1987
      $region72: #{unet_up_origin_forward.1} parent=67 // pred_fallthru
        _
    $region68: #{unet_up_origin_forward.1} parent=5 // pred_fallthru
      _
  $region6: #{unet_up_origin_forward.1} parent=0 // loop_footer
    %s20 = sadd.s32 1, %s16
  $region7: #{unet_up_origin_forward.1} parent=0 // loop_footer_branch
    %15 = sbr.rel target = $region3
  $region8: #{unet_up_origin_forward.1} parent=0 // loop_exit
    _

</llo_original>
